<compile_context>
chip_gen: v7x
topology: tpu7x:2x2x1
jax: 0.10.0
libtpu: 0.0.40
codegen_flags: <defaults>
</compile_context>

<pallas_src>
import functools

import jax
import jax.numpy as jnp
from jax.experimental import pallas as pl
from jax.experimental.pallas import tpu as pltpu

_EPS = 1e-5  # PyTorch BatchNorm1d default


def _vmem_spec():
    return pl.BlockSpec(memory_space=pltpu.MemorySpace.VMEM)


# ---------------------------------------------------------------------------
# Single fused kernel: conv1+BN1+ReLU+pool -> conv2+BN2+ReLU+pool -> view ->
# LSTM (1 layer) -> Linear.
# ---------------------------------------------------------------------------
def _fused_cnn_lstm_kernel(x_ref, w1_ref, g1_ref, b1_ref,
                           w2_ref, g2_ref, b2_ref,
                           wih_ref, whh_ref, bl_ref,
                           wfc_ref, bfc_ref,
                           out_ref, *, padding):
    # x_ref:   (B, L, 1)      channels-last input (Cin = 1)
    # w1_ref:  (K, C1)        conv1 weight (Cin squeezed), w1[k, co]
    # g1/b1:   (1, C1)        BN1 gamma / beta
    # w2_ref:  (K*C1, C2)     conv2 weight in im2col order (row = k*C1 + ci)
    # g2/b2:   (1, C2)
    # wih_ref: (C2, 4H)       LSTM input projection, rows pre-permuted so the
    #                         PyTorch `x.view(B, T, -1)` scramble is absorbed
    # whh_ref: (H, 4H)        recurrent weight
    # bl_ref:  (1, 4H)        b_ih + b_hh
    # wfc_ref: (H, NC), bfc_ref: (1, NC)
    # out_ref: (B, NC)
    B, L, _ = x_ref.shape
    K, C1 = w1_ref.shape
    C2 = w2_ref.shape[1]
    H = whh_ref.shape[0]
    f32 = jnp.float32

    Lpad1 = L + 2 * padding
    Lconv1 = Lpad1 - K + 1
    Lpool1 = (Lconv1 - 2) // 2 + 1
    Lpad2 = Lpool1 + 2 * padding
    Lconv2 = Lpad2 - K + 1
    T = (Lconv2 - 2) // 2 + 1           # LSTM sequence length
    Q = C2 // T                         # view-scramble block (C2 % T == 0, checked in wrapper)

    # ---- conv1 (Cin = 1): VPU broadcast MAC, keeps the MXU free -------------
    zp1 = jnp.zeros((B, padding, 1), f32)
    xpad1 = jnp.concatenate([zp1, x_ref[...], zp1], axis=1)          # (B, Lpad1, 1)
    z1 = jnp.zeros((B, Lconv1, C1), f32)
    for k in range(K):                                               # K = 6 static taps
        z1 = z1 + xpad1[:, k:k + Lconv1, :] * w1_ref[k:k + 1, :]
    # conv bias omitted: cancels exactly in train-mode BatchNorm below.

    # ---- BN1 (batch stats, centered two-pass) + ReLU ------------------------
    n1 = float(B * Lconv1)
    mean1 = jnp.sum(jnp.sum(z1, axis=0), axis=0, keepdims=True) / n1          # (1, C1)
    d1 = z1 - mean1
    var1 = jnp.sum(jnp.sum(d1 * d1, axis=0), axis=0, keepdims=True) / n1      # (1, C1)
    scale1 = g1_ref[...] * jax.lax.rsqrt(var1 + _EPS)
    shift1 = b1_ref[...] - mean1 * scale1
    y1 = jnp.maximum(z1 * scale1 + shift1, 0.0)                               # (B, Lconv1, C1)

    # ---- MaxPool1d(2,2) fused with the zero-pad of conv2 (all in registers) -
    m1 = jnp.maximum(y1[:, 0:2 * Lpool1 - 1, :], y1[:, 1:2 * Lpool1, :])
    zp2 = jnp.zeros((B, padding, C1), f32)
    xpad2 = jnp.concatenate(
        [zp2] + [m1[:, 2 * i:2 * i + 1, :] for i in range(Lpool1)] + [zp2],
        axis=1)                                                               # (B, Lpad2, C1)

    # ---- conv2: im2col -> one (Lconv2, K*C1) x (K*C1, C2) matmul per batch --
    cols = jnp.concatenate([xpad2[:, k:k + Lconv2, :] for k in range(K)], axis=2)
    w2 = w2_ref[...]
    z2 = [jnp.dot(cols[b], w2, preferred_element_type=f32) for b in range(B)]  # (Lconv2, C2)

    # ---- BN2 (batch stats) --------------------------------------------------
    n2 = float(B * Lconv2)
    s2 = jnp.zeros((1, C2), f32)
    for b in range(B):
        s2 = s2 + jnp.sum(z2[b], axis=0, keepdims=True)
    mean2 = s2 / n2
    v2 = jnp.zeros((1, C2), f32)
    for b in range(B):
        d2 = z2[b] - mean2
        v2 = v2 + jnp.sum(d2 * d2, axis=0, keepdims=True)
    scale2 = g2_ref[...] * jax.lax.rsqrt(v2 / n2 + _EPS)
    shift2 = b2_ref[...] - mean2 * scale2

    # ---- ReLU + MaxPool(2,2), then fold the PyTorch `view(B, T, -1)` scramble
    # into the (row-permuted) LSTM input projection.  pooled[b, r, c] is the
    # channels-last conv output (== torch x[b, c, r]); the view gives
    # lstm_in[b, t, q*T + r] = pooled[b, r, t*Q + q], so per (t, b) we build the
    # contraction vector by lane-slicing the T pooled rows and the whole input
    # projection becomes ONE (B*T, C2) x (C2, 4H) matmul.
    prow = []                                                # prow[b][r]: (1, C2)
    for b in range(B):
        y2 = jnp.maximum(z2[b] * scale2 + shift2, 0.0)       # (Lconv2, C2)
        m2 = jnp.maximum(y2[0:2 * T - 1, :], y2[1:2 * T, :])
        prow.append([m2[2 * r:2 * r + 1, :] for r in range(T)])
    xrows = []
    for t in range(T):
        for b in range(B):
            xrows.append(jnp.concatenate(
                [prow[b][r][:, t * Q:(t + 1) * Q] for r in range(T)], axis=1))
    x_cat = jnp.concatenate(xrows, axis=0)                   # (T*B, C2), row = t*B + b

    # ---- LSTM: input projection hoisted out of the recurrence ---------------
    xg = jnp.dot(x_cat, wih_ref[...], preferred_element_type=f32) + bl_ref[...]  # (T*B, 4H)
    whh = whh_ref[...]
    h = jnp.zeros((B, H), f32)
    c = jnp.zeros((B, H), f32)
    for t in range(T):   # T = 4 (static); switch to lax.fori_loop if T grows
        gates = xg[t * B:(t + 1) * B, :] + jnp.dot(h, whh, preferred_element_type=f32)
        i_g = jax.nn.sigmoid(gates[:, 0:H])
        f_g = jax.nn.sigmoid(gates[:, H:2 * H])
        g_g = jnp.tanh(gates[:, 2 * H:3 * H])
        o_g = jax.nn.sigmoid(gates[:, 3 * H:4 * H])
        c = f_g * c + i_g * g_g
        h = o_g * jnp.tanh(c)

    # ---- fused final Linear: only (B, num_classes) leaves the kernel --------
    out_ref[...] = jnp.dot(h, wfc_ref[...], preferred_element_type=f32) + bfc_ref[...]


# ---------------------------------------------------------------------------
# Wrapper: weight re-layout (im2col ordering, view-scramble permutation) + the
# single pallas_call.
# ---------------------------------------------------------------------------
def cnn_lstm_forward(params, x_ncl, *, padding, pool_size=2, pool_stride=2):
    assert pool_size == 2 and pool_stride == 2, "kernel implements MaxPool1d(2, 2)"
    B, cin, L = x_ncl.shape
    assert cin == 1
    w1 = params["conv1_w"]                       # (K, C1)
    K, C1 = w1.shape
    w2 = params["conv2_w"]                       # (K, C1, C2)
    C2 = w2.shape[2]
    wih = params["lstm_wih"]                     # (C2, 4H)
    whh = params["lstm_whh"]                     # (H, 4H)
    H = whh.shape[0]
    num_classes = params["fc_w"].shape[1]

    # static geometry (stride=1 convs, pool 2/2)
    Lconv1 = L + 2 * padding - K + 1
    Lpool1 = (Lconv1 - 2) // 2 + 1
    Lconv2 = Lpool1 + 2 * padding - K + 1
    T = (Lconv2 - 2) // 2 + 1
    assert T >= 1 and C2 % T == 0, "view(B, T, -1) weight-folding assumes T | C2"
    Q = C2 // T

    # PyTorch NCL (B, 1, L) -> channels-last (B, L, 1): pure reshape (Cin == 1).
    x_blc = x_ncl.astype(jnp.float32).reshape(B, L, 1)
    # conv2 weight into im2col order: row index = k*C1 + ci.
    w2_cat = w2.reshape(K * C1, C2)
    # Fold the raw-memory `x.view(B, T, -1)` reinterpretation of the (B, C2, T)
    # conv output into the LSTM input weight: view feature f of step t reads
    # pooled[channel = t*Q + f//T, pos = f % T]  =>  row (r*Q + q) <- wih[q*T + r].
    wih_cat = wih.reshape(Q, T, 4 * H).transpose(1, 0, 2).reshape(C2, 4 * H)
    # NOTE: conv biases are not passed -- a per-channel additive shift cancels
    # exactly in training-mode BatchNorm (batch mean absorbs it).

    kernel = functools.partial(_fused_cnn_lstm_kernel, padding=padding)
    return pl.pallas_call(
        kernel,
        out_shape=jax.ShapeDtypeStruct((B, num_classes), jnp.float32),
        in_specs=[_vmem_spec()] * 12,
        out_specs=_vmem_spec(),
    )(x_blc, w1, params["bn1_g"], params["bn1_b"],
      w2_cat, params["bn2_g"], params["bn2_b"],
      wih_cat, whh, params["lstm_b"],
      params["fc_w"], params["fc_b"])


# ---------------------------------------------------------------------------
# Parameters (deterministic, PyTorch-like uniform fan-in init), num_layers == 1.
# ---------------------------------------------------------------------------
def init_params(key, hidden_size, num_classes, kernel_size):
    ks = jax.random.split(key, 10)

    def u(k, shape, fan_in):
        bound = 1.0 / (fan_in ** 0.5)
        return jax.random.uniform(k, shape, jnp.float32, -bound, bound)

    C1, C2, H = 32, 64, hidden_size
    return {
        "conv1_w": u(ks[0], (kernel_size, C1), 1 * kernel_size),
        "conv1_b": u(ks[1], (1, C1), 1 * kernel_size),   # unused: cancels in train-mode BN
        "bn1_g": jnp.ones((1, C1), jnp.float32),
        "bn1_b": jnp.zeros((1, C1), jnp.float32),
        "conv2_w": u(ks[2], (kernel_size, C1, C2), C1 * kernel_size),
        "conv2_b": u(ks[3], (1, C2), C1 * kernel_size),  # unused: cancels in train-mode BN
        "bn2_g": jnp.ones((1, C2), jnp.float32),
        "bn2_b": jnp.zeros((1, C2), jnp.float32),
        "lstm_wih": u(ks[4], (C2, 4 * H), H),
        "lstm_whh": u(ks[5], (H, 4 * H), H),
        "lstm_b": u(ks[6], (1, 4 * H), H) + u(ks[7], (1, 4 * H), H),   # b_ih + b_hh
        "fc_w": u(ks[8], (H, num_classes), H),
        "fc_b": u(ks[9], (1, num_classes), H),
    }


# ---------------------------------------------------------------------------
# Pure-JAX reference (straightforward transpose + view path) for validation.
# ---------------------------------------------------------------------------
def _reference_forward(params, x_ncl, *, padding):
    hp = jax.lax.Precision.HIGHEST
    B = x_ncl.shape[0]
    x = jnp.transpose(x_ncl.astype(jnp.float32), (0, 2, 1))          # (B, L, 1)

    def conv_bn_relu_pool(x, w3, gamma, beta):                       # w3: (K, Cin, Cout)
        K = w3.shape[0]
        xp = jnp.pad(x, ((0, 0), (padding, padding), (0, 0)))
        Lc = xp.shape[1] - K + 1
        z = sum(jnp.einsum("blc,cd->bld", xp[:, k:k + Lc, :], w3[k], precision=hp)
                for k in range(K))
        mean = jnp.mean(z, axis=(0, 1), keepdims=True)
        var = jnp.mean((z - mean) ** 2, axis=(0, 1), keepdims=True)
        y = jnp.maximum(gamma * (z - mean) * jax.lax.rsqrt(var + _EPS) + beta, 0.0)
        Lp = (Lc - 2) // 2 + 1
        return jnp.maximum(y[:, 0:2 * Lp:2, :], y[:, 1:2 * Lp:2, :])

    x = conv_bn_relu_pool(x, params["conv1_w"][:, None, :], params["bn1_g"], params["bn1_b"])
    x = conv_bn_relu_pool(x, params["conv2_w"], params["bn2_g"], params["bn2_b"])
    T = x.shape[1]
    lstm_in = jnp.transpose(x, (0, 2, 1)).reshape(B, T, -1)          # == torch .view
    H = params["lstm_whh"].shape[0]
    h = jnp.zeros((B, H), jnp.float32)
    c = jnp.zeros((B, H), jnp.float32)
    for t in range(T):
        gates = (jnp.dot(lstm_in[:, t, :], params["lstm_wih"], precision=hp)
                 + jnp.dot(h, params["lstm_whh"], precision=hp) + params["lstm_b"])
        i = jax.nn.sigmoid(gates[:, 0:H])
        f = jax.nn.sigmoid(gates[:, H:2 * H])
        g = jnp.tanh(gates[:, 2 * H:3 * H])
        o = jax.nn.sigmoid(gates[:, 3 * H:4 * H])
        c = f * c + i * g
        h = o * jnp.tanh(c)
    return jnp.dot(h, params["fc_w"], precision=hp) + params["fc_b"]


if __name__ == "__main__":
    B, L = 2, 16
    hidden_size, num_classes = 32, 5
    kernel_size, padding = 6, 3

    key = jax.random.PRNGKey(0)
    x_key, p_key = jax.random.split(key)
    x = jax.random.normal(x_key, (B, 1, L), jnp.float32)      # PyTorch NCL input
    params = init_params(p_key, hidden_size, num_classes, kernel_size)

    fwd = jax.jit(functools.partial(cnn_lstm_forward, padding=padding))
    out = fwd(params, x)
    jax.block_until_ready(out)
    assert out.shape == (B, num_classes), out.shape

    ref = _reference_forward(params, x, padding=padding)
    assert jnp.allclose(out, ref, rtol=2e-3, atol=2e-3), (out, ref)
    print("KERNEL_OK")
</pallas_src>

<mosaic_0001>
module attributes {stable_mosaic.version = 11 : i64} {
  func.func @_fused_cnn_lstm_kernel(%arg0: memref<2x16x1xf32, #tpu.memory_space<vmem>>, %arg1: memref<6x32xf32, #tpu.memory_space<vmem>>, %arg2: memref<1x32xf32, #tpu.memory_space<vmem>>, %arg3: memref<1x32xf32, #tpu.memory_space<vmem>>, %arg4: memref<192x64xf32, #tpu.memory_space<vmem>>, %arg5: memref<1x64xf32, #tpu.memory_space<vmem>>, %arg6: memref<1x64xf32, #tpu.memory_space<vmem>>, %arg7: memref<64x128xf32, #tpu.memory_space<vmem>>, %arg8: memref<32x128xf32, #tpu.memory_space<vmem>>, %arg9: memref<1x128xf32, #tpu.memory_space<vmem>>, %arg10: memref<32x5xf32, #tpu.memory_space<vmem>>, %arg11: memref<1x5xf32, #tpu.memory_space<vmem>>, %arg12: memref<2x5xf32, #tpu.memory_space<vmem>>) attributes {dimension_semantics = [], scalar_prefetch = 0 : i64, scratch_operands = 0 : i64, tpu.core_type = #tpu.core_type<tc>} {
    %cst = arith.constant 0.000000e+00 : f32
    %0 = vector.broadcast %cst : f32 to vector<2x3x1xf32>
    %c0 = arith.constant 0 : index
    %c0_0 = arith.constant 0 : index
    %c0_1 = arith.constant 0 : index
    %1 = vector.load %arg0[%c0, %c0_0, %c0_1] : memref<2x16x1xf32, #tpu.memory_space<vmem>>, vector<2x16x1xf32>
    %2 = tpu.concatenate %0, %1, %0 in 1 : vector<2x3x1xf32>, vector<2x16x1xf32>, vector<2x3x1xf32> -> vector<2x22x1xf32>
    %cst_2 = arith.constant 0.000000e+00 : f32
    %3 = vector.broadcast %cst_2 : f32 to vector<2x17x32xf32>
    %4 = vector.extract_strided_slice %2 {offsets = [0, 0, 0], sizes = [2, 17, 1], strides = [1, 1, 1]} : vector<2x22x1xf32> to vector<2x17x1xf32>
    %c0_3 = arith.constant 0 : index
    %c0_4 = arith.constant 0 : index
    %5 = vector.load %arg1[%c0_3, %c0_4] : memref<6x32xf32, #tpu.memory_space<vmem>>, vector<1x32xf32>
    %6 = vector.shape_cast %5 : vector<1x32xf32> to vector<1x1x32xf32>
    %7 = vector.broadcast %4 : vector<2x17x1xf32> to vector<2x17x32xf32>
    %8 = vector.broadcast %6 : vector<1x1x32xf32> to vector<2x17x32xf32>
    %9 = arith.mulf %7, %8 : vector<2x17x32xf32>
    %10 = arith.addf %3, %9 : vector<2x17x32xf32>
    %11 = vector.extract_strided_slice %2 {offsets = [0, 1, 0], sizes = [2, 17, 1], strides = [1, 1, 1]} : vector<2x22x1xf32> to vector<2x17x1xf32>
    %c1 = arith.constant 1 : index
    %c0_5 = arith.constant 0 : index
    %12 = vector.load %arg1[%c1, %c0_5] : memref<6x32xf32, #tpu.memory_space<vmem>>, vector<1x32xf32>
    %13 = vector.shape_cast %12 : vector<1x32xf32> to vector<1x1x32xf32>
    %14 = vector.broadcast %11 : vector<2x17x1xf32> to vector<2x17x32xf32>
    %15 = vector.broadcast %13 : vector<1x1x32xf32> to vector<2x17x32xf32>
    %16 = arith.mulf %14, %15 : vector<2x17x32xf32>
    %17 = arith.addf %10, %16 : vector<2x17x32xf32>
    %18 = vector.extract_strided_slice %2 {offsets = [0, 2, 0], sizes = [2, 17, 1], strides = [1, 1, 1]} : vector<2x22x1xf32> to vector<2x17x1xf32>
    %c2 = arith.constant 2 : index
    %c0_6 = arith.constant 0 : index
    %19 = vector.load %arg1[%c2, %c0_6] : memref<6x32xf32, #tpu.memory_space<vmem>>, vector<1x32xf32>
    %20 = vector.shape_cast %19 : vector<1x32xf32> to vector<1x1x32xf32>
    %21 = vector.broadcast %18 : vector<2x17x1xf32> to vector<2x17x32xf32>
    %22 = vector.broadcast %20 : vector<1x1x32xf32> to vector<2x17x32xf32>
    %23 = arith.mulf %21, %22 : vector<2x17x32xf32>
    %24 = arith.addf %17, %23 : vector<2x17x32xf32>
    %25 = vector.extract_strided_slice %2 {offsets = [0, 3, 0], sizes = [2, 17, 1], strides = [1, 1, 1]} : vector<2x22x1xf32> to vector<2x17x1xf32>
    %c3 = arith.constant 3 : index
    %c0_7 = arith.constant 0 : index
    %26 = vector.load %arg1[%c3, %c0_7] : memref<6x32xf32, #tpu.memory_space<vmem>>, vector<1x32xf32>
    %27 = vector.shape_cast %26 : vector<1x32xf32> to vector<1x1x32xf32>
    %28 = vector.broadcast %25 : vector<2x17x1xf32> to vector<2x17x32xf32>
    %29 = vector.broadcast %27 : vector<1x1x32xf32> to vector<2x17x32xf32>
    %30 = arith.mulf %28, %29 : vector<2x17x32xf32>
    %31 = arith.addf %24, %30 : vector<2x17x32xf32>
    %32 = vector.extract_strided_slice %2 {offsets = [0, 4, 0], sizes = [2, 17, 1], strides = [1, 1, 1]} : vector<2x22x1xf32> to vector<2x17x1xf32>
    %c4 = arith.constant 4 : index
    %c0_8 = arith.constant 0 : index
    %33 = vector.load %arg1[%c4, %c0_8] : memref<6x32xf32, #tpu.memory_space<vmem>>, vector<1x32xf32>
    %34 = vector.shape_cast %33 : vector<1x32xf32> to vector<1x1x32xf32>
    %35 = vector.broadcast %32 : vector<2x17x1xf32> to vector<2x17x32xf32>
    %36 = vector.broadcast %34 : vector<1x1x32xf32> to vector<2x17x32xf32>
    %37 = arith.mulf %35, %36 : vector<2x17x32xf32>
    %38 = arith.addf %31, %37 : vector<2x17x32xf32>
    %39 = vector.extract_strided_slice %2 {offsets = [0, 5, 0], sizes = [2, 17, 1], strides = [1, 1, 1]} : vector<2x22x1xf32> to vector<2x17x1xf32>
    %c5 = arith.constant 5 : index
    %c0_9 = arith.constant 0 : index
    %40 = vector.load %arg1[%c5, %c0_9] : memref<6x32xf32, #tpu.memory_space<vmem>>, vector<1x32xf32>
    %41 = vector.shape_cast %40 : vector<1x32xf32> to vector<1x1x32xf32>
    %42 = vector.broadcast %39 : vector<2x17x1xf32> to vector<2x17x32xf32>
    %43 = vector.broadcast %41 : vector<1x1x32xf32> to vector<2x17x32xf32>
    %44 = arith.mulf %42, %43 : vector<2x17x32xf32>
    %45 = arith.addf %38, %44 : vector<2x17x32xf32>
    %cst_10 = arith.constant dense<0.000000e+00> : vector<17x32xf32>
    %46 = vector.multi_reduction <add>, %45, %cst_10 [0] : vector<2x17x32xf32> to vector<17x32xf32>
    %cst_11 = arith.constant dense<0.000000e+00> : vector<32xf32>
    %47 = vector.multi_reduction <add>, %46, %cst_11 [0] : vector<17x32xf32> to vector<32xf32>
    %48 = vector.shape_cast %47 : vector<32xf32> to vector<1x32xf32>
    %cst_12 = arith.constant 3.400000e+01 : f32
    %49 = vector.broadcast %cst_12 : f32 to vector<1x32xf32>
    %50 = arith.divf %48, %49 : vector<1x32xf32>
    %51 = vector.shape_cast %50 : vector<1x32xf32> to vector<1x1x32xf32>
    %52 = vector.broadcast %51 : vector<1x1x32xf32> to vector<2x17x32xf32>
    %53 = arith.subf %45, %52 : vector<2x17x32xf32>
    %54 = arith.mulf %53, %53 : vector<2x17x32xf32>
    %cst_13 = arith.constant dense<0.000000e+00> : vector<17x32xf32>
    %55 = vector.multi_reduction <add>, %54, %cst_13 [0] : vector<2x17x32xf32> to vector<17x32xf32>
    %cst_14 = arith.constant dense<0.000000e+00> : vector<32xf32>
    %56 = vector.multi_reduction <add>, %55, %cst_14 [0] : vector<17x32xf32> to vector<32xf32>
    %57 = vector.shape_cast %56 : vector<32xf32> to vector<1x32xf32>
    %cst_15 = arith.constant 3.400000e+01 : f32
    %58 = vector.broadcast %cst_15 : f32 to vector<1x32xf32>
    %59 = arith.divf %57, %58 : vector<1x32xf32>
    %c0_16 = arith.constant 0 : index
    %c0_17 = arith.constant 0 : index
    %60 = vector.load %arg2[%c0_16, %c0_17] : memref<1x32xf32, #tpu.memory_space<vmem>>, vector<1x32xf32>
    %cst_18 = arith.constant 9.99999974E-6 : f32
    %61 = vector.broadcast %cst_18 : f32 to vector<1x32xf32>
    %62 = arith.addf %59, %61 : vector<1x32xf32>
    %63 = math.rsqrt %62 : vector<1x32xf32>
    %64 = arith.mulf %60, %63 : vector<1x32xf32>
    %c0_19 = arith.constant 0 : index
    %c0_20 = arith.constant 0 : index
    %65 = vector.load %arg3[%c0_19, %c0_20] : memref<1x32xf32, #tpu.memory_space<vmem>>, vector<1x32xf32>
    %66 = arith.mulf %50, %64 : vector<1x32xf32>
    %67 = arith.subf %65, %66 : vector<1x32xf32>
    %68 = vector.shape_cast %64 : vector<1x32xf32> to vector<1x1x32xf32>
    %69 = vector.broadcast %68 : vector<1x1x32xf32> to vector<2x17x32xf32>
    %70 = arith.mulf %45, %69 : vector<2x17x32xf32>
    %71 = vector.shape_cast %67 : vector<1x32xf32> to vector<1x1x32xf32>
    %72 = vector.broadcast %71 : vector<1x1x32xf32> to vector<2x17x32xf32>
    %73 = arith.addf %70, %72 : vector<2x17x32xf32>
    %cst_21 = arith.constant 0.000000e+00 : f32
    %74 = vector.broadcast %cst_21 : f32 to vector<2x17x32xf32>
    %75 = arith.maximumf %73, %74 : vector<2x17x32xf32>
    %76 = vector.extract_strided_slice %75 {offsets = [0, 0, 0], sizes = [2, 15, 32], strides = [1, 1, 1]} : vector<2x17x32xf32> to vector<2x15x32xf32>
    %77 = vector.extract_strided_slice %75 {offsets = [0, 1, 0], sizes = [2, 15, 32], strides = [1, 1, 1]} : vector<2x17x32xf32> to vector<2x15x32xf32>
    %78 = arith.maximumf %76, %77 : vector<2x15x32xf32>
    %cst_22 = arith.constant 0.000000e+00 : f32
    %79 = vector.broadcast %cst_22 : f32 to vector<2x3x32xf32>
    %80 = vector.extract_strided_slice %78 {offsets = [0, 0, 0], sizes = [2, 1, 32], strides = [1, 1, 1]} : vector<2x15x32xf32> to vector<2x1x32xf32>
    %81 = vector.extract_strided_slice %78 {offsets = [0, 2, 0], sizes = [2, 1, 32], strides = [1, 1, 1]} : vector<2x15x32xf32> to vector<2x1x32xf32>
    %82 = vector.extract_strided_slice %78 {offsets = [0, 4, 0], sizes = [2, 1, 32], strides = [1, 1, 1]} : vector<2x15x32xf32> to vector<2x1x32xf32>
    %83 = vector.extract_strided_slice %78 {offsets = [0, 6, 0], sizes = [2, 1, 32], strides = [1, 1, 1]} : vector<2x15x32xf32> to vector<2x1x32xf32>
    %84 = vector.extract_strided_slice %78 {offsets = [0, 8, 0], sizes = [2, 1, 32], strides = [1, 1, 1]} : vector<2x15x32xf32> to vector<2x1x32xf32>
    %85 = vector.extract_strided_slice %78 {offsets = [0, 10, 0], sizes = [2, 1, 32], strides = [1, 1, 1]} : vector<2x15x32xf32> to vector<2x1x32xf32>
    %86 = vector.extract_strided_slice %78 {offsets = [0, 12, 0], sizes = [2, 1, 32], strides = [1, 1, 1]} : vector<2x15x32xf32> to vector<2x1x32xf32>
    %87 = vector.extract_strided_slice %78 {offsets = [0, 14, 0], sizes = [2, 1, 32], strides = [1, 1, 1]} : vector<2x15x32xf32> to vector<2x1x32xf32>
    %88 = tpu.concatenate %79, %80, %81, %82, %83, %84, %85, %86, %87, %79 in 1 : vector<2x3x32xf32>, vector<2x1x32xf32>, vector<2x1x32xf32>, vector<2x1x32xf32>, vector<2x1x32xf32>, vector<2x1x32xf32>, vector<2x1x32xf32>, vector<2x1x32xf32>, vector<2x1x32xf32>, vector<2x3x32xf32> -> vector<2x14x32xf32>
    %89 = vector.extract_strided_slice %88 {offsets = [0, 0, 0], sizes = [2, 9, 32], strides = [1, 1, 1]} : vector<2x14x32xf32> to vector<2x9x32xf32>
    %90 = vector.extract_strided_slice %88 {offsets = [0, 1, 0], sizes = [2, 9, 32], strides = [1, 1, 1]} : vector<2x14x32xf32> to vector<2x9x32xf32>
    %91 = vector.extract_strided_slice %88 {offsets = [0, 2, 0], sizes = [2, 9, 32], strides = [1, 1, 1]} : vector<2x14x32xf32> to vector<2x9x32xf32>
    %92 = vector.extract_strided_slice %88 {offsets = [0, 3, 0], sizes = [2, 9, 32], strides = [1, 1, 1]} : vector<2x14x32xf32> to vector<2x9x32xf32>
    %93 = vector.extract_strided_slice %88 {offsets = [0, 4, 0], sizes = [2, 9, 32], strides = [1, 1, 1]} : vector<2x14x32xf32> to vector<2x9x32xf32>
    %94 = vector.extract_strided_slice %88 {offsets = [0, 5, 0], sizes = [2, 9, 32], strides = [1, 1, 1]} : vector<2x14x32xf32> to vector<2x9x32xf32>
    %95 = tpu.concatenate %89, %90, %91, %92, %93, %94 in 2 : vector<2x9x32xf32>, vector<2x9x32xf32>, vector<2x9x32xf32>, vector<2x9x32xf32>, vector<2x9x32xf32>, vector<2x9x32xf32> -> vector<2x9x192xf32>
    %c0_23 = arith.constant 0 : index
    %c0_24 = arith.constant 0 : index
    %96 = vector.load %arg4[%c0_23, %c0_24] : memref<192x64xf32, #tpu.memory_space<vmem>>, vector<192x64xf32>
    %97 = vector.extract_strided_slice %95 {offsets = [0, 0, 0], sizes = [1, 9, 192], strides = [1, 1, 1]} : vector<2x9x192xf32> to vector<1x9x192xf32>
    %98 = vector.shape_cast %97 : vector<1x9x192xf32> to vector<9x192xf32>
    %cst_25 = arith.constant dense<0.000000e+00> : vector<9x64xf32>
    %99 = tpu.matmul %98, %96, %cst_25 {dimension_numbers = #tpu.dot_dimension_numbers<[1], [0], [0], [1], [0, 0, 1, 1], [], []>} : vector<9x192xf32>, vector<192x64xf32>, vector<9x64xf32> -> vector<9x64xf32>
    %100 = vector.extract_strided_slice %95 {offsets = [1, 0, 0], sizes = [1, 9, 192], strides = [1, 1, 1]} : vector<2x9x192xf32> to vector<1x9x192xf32>
    %101 = vector.shape_cast %100 : vector<1x9x192xf32> to vector<9x192xf32>
    %cst_26 = arith.constant dense<0.000000e+00> : vector<9x64xf32>
    %102 = tpu.matmul %101, %96, %cst_26 {dimension_numbers = #tpu.dot_dimension_numbers<[1], [0], [0], [1], [0, 0, 1, 1], [], []>} : vector<9x192xf32>, vector<192x64xf32>, vector<9x64xf32> -> vector<9x64xf32>
    %cst_27 = arith.constant 0.000000e+00 : f32
    %103 = vector.broadcast %cst_27 : f32 to vector<1x64xf32>
    %cst_28 = arith.constant dense<0.000000e+00> : vector<64xf32>
    %104 = vector.multi_reduction <add>, %99, %cst_28 [0] : vector<9x64xf32> to vector<64xf32>
    %105 = vector.shape_cast %104 : vector<64xf32> to vector<1x64xf32>
    %106 = arith.addf %103, %105 : vector<1x64xf32>
    %cst_29 = arith.constant dense<0.000000e+00> : vector<64xf32>
    %107 = vector.multi_reduction <add>, %102, %cst_29 [0] : vector<9x64xf32> to vector<64xf32>
    %108 = vector.shape_cast %107 : vector<64xf32> to vector<1x64xf32>
    %109 = arith.addf %106, %108 : vector<1x64xf32>
    %cst_30 = arith.constant 1.800000e+01 : f32
    %110 = vector.broadcast %cst_30 : f32 to vector<1x64xf32>
    %111 = arith.divf %109, %110 : vector<1x64xf32>
    %cst_31 = arith.constant 0.000000e+00 : f32
    %112 = vector.broadcast %cst_31 : f32 to vector<1x64xf32>
    %113 = vector.broadcast %111 : vector<1x64xf32> to vector<9x64xf32>
    %114 = arith.subf %99, %113 : vector<9x64xf32>
    %115 = arith.mulf %114, %114 : vector<9x64xf32>
    %cst_32 = arith.constant dense<0.000000e+00> : vector<64xf32>
    %116 = vector.multi_reduction <add>, %115, %cst_32 [0] : vector<9x64xf32> to vector<64xf32>
    %117 = vector.shape_cast %116 : vector<64xf32> to vector<1x64xf32>
    %118 = arith.addf %112, %117 : vector<1x64xf32>
    %119 = vector.broadcast %111 : vector<1x64xf32> to vector<9x64xf32>
    %120 = arith.subf %102, %119 : vector<9x64xf32>
    %121 = arith.mulf %120, %120 : vector<9x64xf32>
    %cst_33 = arith.constant dense<0.000000e+00> : vector<64xf32>
    %122 = vector.multi_reduction <add>, %121, %cst_33 [0] : vector<9x64xf32> to vector<64xf32>
    %123 = vector.shape_cast %122 : vector<64xf32> to vector<1x64xf32>
    %124 = arith.addf %118, %123 : vector<1x64xf32>
    %c0_34 = arith.constant 0 : index
    %c0_35 = arith.constant 0 : index
    %125 = vector.load %arg5[%c0_34, %c0_35] : memref<1x64xf32, #tpu.memory_space<vmem>>, vector<1x64xf32>
    %cst_36 = arith.constant 1.800000e+01 : f32
    %126 = vector.broadcast %cst_36 : f32 to vector<1x64xf32>
    %127 = arith.divf %124, %126 : vector<1x64xf32>
    %cst_37 = arith.constant 9.99999974E-6 : f32
    %128 = vector.broadcast %cst_37 : f32 to vector<1x64xf32>
    %129 = arith.addf %127, %128 : vector<1x64xf32>
    %130 = math.rsqrt %129 : vector<1x64xf32>
    %131 = arith.mulf %125, %130 : vector<1x64xf32>
    %c0_38 = arith.constant 0 : index
    %c0_39 = arith.constant 0 : index
    %132 = vector.load %arg6[%c0_38, %c0_39] : memref<1x64xf32, #tpu.memory_space<vmem>>, vector<1x64xf32>
    %133 = arith.mulf %111, %131 : vector<1x64xf32>
    %134 = arith.subf %132, %133 : vector<1x64xf32>
    %135 = vector.broadcast %131 : vector<1x64xf32> to vector<9x64xf32>
    %136 = arith.mulf %99, %135 : vector<9x64xf32>
    %137 = vector.broadcast %134 : vector<1x64xf32> to vector<9x64xf32>
    %138 = arith.addf %136, %137 : vector<9x64xf32>
    %cst_40 = arith.constant 0.000000e+00 : f32
    %139 = vector.broadcast %cst_40 : f32 to vector<9x64xf32>
    %140 = arith.maximumf %138, %139 : vector<9x64xf32>
    %141 = vector.extract_strided_slice %140 {offsets = [0, 0], sizes = [7, 64], strides = [1, 1]} : vector<9x64xf32> to vector<7x64xf32>
    %142 = vector.extract_strided_slice %140 {offsets = [1, 0], sizes = [7, 64], strides = [1, 1]} : vector<9x64xf32> to vector<7x64xf32>
    %143 = arith.maximumf %141, %142 : vector<7x64xf32>
    %144 = vector.extract_strided_slice %143 {offsets = [0, 0], sizes = [1, 64], strides = [1, 1]} : vector<7x64xf32> to vector<1x64xf32>
    %145 = vector.extract_strided_slice %143 {offsets = [2, 0], sizes = [1, 64], strides = [1, 1]} : vector<7x64xf32> to vector<1x64xf32>
    %146 = vector.extract_strided_slice %143 {offsets = [4, 0], sizes = [1, 64], strides = [1, 1]} : vector<7x64xf32> to vector<1x64xf32>
    %147 = vector.extract_strided_slice %143 {offsets = [6, 0], sizes = [1, 64], strides = [1, 1]} : vector<7x64xf32> to vector<1x64xf32>
    %148 = vector.broadcast %131 : vector<1x64xf32> to vector<9x64xf32>
    %149 = arith.mulf %102, %148 : vector<9x64xf32>
    %150 = vector.broadcast %134 : vector<1x64xf32> to vector<9x64xf32>
    %151 = arith.addf %149, %150 : vector<9x64xf32>
    %cst_41 = arith.constant 0.000000e+00 : f32
    %152 = vector.broadcast %cst_41 : f32 to vector<9x64xf32>
    %153 = arith.maximumf %151, %152 : vector<9x64xf32>
    %154 = vector.extract_strided_slice %153 {offsets = [0, 0], sizes = [7, 64], strides = [1, 1]} : vector<9x64xf32> to vector<7x64xf32>
    %155 = vector.extract_strided_slice %153 {offsets = [1, 0], sizes = [7, 64], strides = [1, 1]} : vector<9x64xf32> to vector<7x64xf32>
    %156 = arith.maximumf %154, %155 : vector<7x64xf32>
    %157 = vector.extract_strided_slice %156 {offsets = [0, 0], sizes = [1, 64], strides = [1, 1]} : vector<7x64xf32> to vector<1x64xf32>
    %158 = vector.extract_strided_slice %156 {offsets = [2, 0], sizes = [1, 64], strides = [1, 1]} : vector<7x64xf32> to vector<1x64xf32>
    %159 = vector.extract_strided_slice %156 {offsets = [4, 0], sizes = [1, 64], strides = [1, 1]} : vector<7x64xf32> to vector<1x64xf32>
    %160 = vector.extract_strided_slice %156 {offsets = [6, 0], sizes = [1, 64], strides = [1, 1]} : vector<7x64xf32> to vector<1x64xf32>
    %161 = vector.extract_strided_slice %144 {offsets = [0, 0], sizes = [1, 16], strides = [1, 1]} : vector<1x64xf32> to vector<1x16xf32>
    %162 = vector.extract_strided_slice %145 {offsets = [0, 0], sizes = [1, 16], strides = [1, 1]} : vector<1x64xf32> to vector<1x16xf32>
    %163 = vector.extract_strided_slice %146 {offsets = [0, 0], sizes = [1, 16], strides = [1, 1]} : vector<1x64xf32> to vector<1x16xf32>
    %164 = vector.extract_strided_slice %147 {offsets = [0, 0], sizes = [1, 16], strides = [1, 1]} : vector<1x64xf32> to vector<1x16xf32>
    %165 = tpu.concatenate %161, %162, %163, %164 in 1 : vector<1x16xf32>, vector<1x16xf32>, vector<1x16xf32>, vector<1x16xf32> -> vector<1x64xf32>
    %166 = vector.extract_strided_slice %157 {offsets = [0, 0], sizes = [1, 16], strides = [1, 1]} : vector<1x64xf32> to vector<1x16xf32>
    %167 = vector.extract_strided_slice %158 {offsets = [0, 0], sizes = [1, 16], strides = [1, 1]} : vector<1x64xf32> to vector<1x16xf32>
    %168 = vector.extract_strided_slice %159 {offsets = [0, 0], sizes = [1, 16], strides = [1, 1]} : vector<1x64xf32> to vector<1x16xf32>
    %169 = vector.extract_strided_slice %160 {offsets = [0, 0], sizes = [1, 16], strides = [1, 1]} : vector<1x64xf32> to vector<1x16xf32>
    %170 = tpu.concatenate %166, %167, %168, %169 in 1 : vector<1x16xf32>, vector<1x16xf32>, vector<1x16xf32>, vector<1x16xf32> -> vector<1x64xf32>
    %171 = vector.extract_strided_slice %144 {offsets = [0, 16], sizes = [1, 16], strides = [1, 1]} : vector<1x64xf32> to vector<1x16xf32>
    %172 = vector.extract_strided_slice %145 {offsets = [0, 16], sizes = [1, 16], strides = [1, 1]} : vector<1x64xf32> to vector<1x16xf32>
    %173 = vector.extract_strided_slice %146 {offsets = [0, 16], sizes = [1, 16], strides = [1, 1]} : vector<1x64xf32> to vector<1x16xf32>
    %174 = vector.extract_strided_slice %147 {offsets = [0, 16], sizes = [1, 16], strides = [1, 1]} : vector<1x64xf32> to vector<1x16xf32>
    %175 = tpu.concatenate %171, %172, %173, %174 in 1 : vector<1x16xf32>, vector<1x16xf32>, vector<1x16xf32>, vector<1x16xf32> -> vector<1x64xf32>
    %176 = vector.extract_strided_slice %157 {offsets = [0, 16], sizes = [1, 16], strides = [1, 1]} : vector<1x64xf32> to vector<1x16xf32>
    %177 = vector.extract_strided_slice %158 {offsets = [0, 16], sizes = [1, 16], strides = [1, 1]} : vector<1x64xf32> to vector<1x16xf32>
    %178 = vector.extract_strided_slice %159 {offsets = [0, 16], sizes = [1, 16], strides = [1, 1]} : vector<1x64xf32> to vector<1x16xf32>
    %179 = vector.extract_strided_slice %160 {offsets = [0, 16], sizes = [1, 16], strides = [1, 1]} : vector<1x64xf32> to vector<1x16xf32>
    %180 = tpu.concatenate %176, %177, %178, %179 in 1 : vector<1x16xf32>, vector<1x16xf32>, vector<1x16xf32>, vector<1x16xf32> -> vector<1x64xf32>
    %181 = vector.extract_strided_slice %144 {offsets = [0, 32], sizes = [1, 16], strides = [1, 1]} : vector<1x64xf32> to vector<1x16xf32>
    %182 = vector.extract_strided_slice %145 {offsets = [0, 32], sizes = [1, 16], strides = [1, 1]} : vector<1x64xf32> to vector<1x16xf32>
    %183 = vector.extract_strided_slice %146 {offsets = [0, 32], sizes = [1, 16], strides = [1, 1]} : vector<1x64xf32> to vector<1x16xf32>
    %184 = vector.extract_strided_slice %147 {offsets = [0, 32], sizes = [1, 16], strides = [1, 1]} : vector<1x64xf32> to vector<1x16xf32>
    %185 = tpu.concatenate %181, %182, %183, %184 in 1 : vector<1x16xf32>, vector<1x16xf32>, vector<1x16xf32>, vector<1x16xf32> -> vector<1x64xf32>
    %186 = vector.extract_strided_slice %157 {offsets = [0, 32], sizes = [1, 16], strides = [1, 1]} : vector<1x64xf32> to vector<1x16xf32>
    %187 = vector.extract_strided_slice %158 {offsets = [0, 32], sizes = [1, 16], strides = [1, 1]} : vector<1x64xf32> to vector<1x16xf32>
    %188 = vector.extract_strided_slice %159 {offsets = [0, 32], sizes = [1, 16], strides = [1, 1]} : vector<1x64xf32> to vector<1x16xf32>
    %189 = vector.extract_strided_slice %160 {offsets = [0, 32], sizes = [1, 16], strides = [1, 1]} : vector<1x64xf32> to vector<1x16xf32>
    %190 = tpu.concatenate %186, %187, %188, %189 in 1 : vector<1x16xf32>, vector<1x16xf32>, vector<1x16xf32>, vector<1x16xf32> -> vector<1x64xf32>
    %191 = vector.extract_strided_slice %144 {offsets = [0, 48], sizes = [1, 16], strides = [1, 1]} : vector<1x64xf32> to vector<1x16xf32>
    %192 = vector.extract_strided_slice %145 {offsets = [0, 48], sizes = [1, 16], strides = [1, 1]} : vector<1x64xf32> to vector<1x16xf32>
    %193 = vector.extract_strided_slice %146 {offsets = [0, 48], sizes = [1, 16], strides = [1, 1]} : vector<1x64xf32> to vector<1x16xf32>
    %194 = vector.extract_strided_slice %147 {offsets = [0, 48], sizes = [1, 16], strides = [1, 1]} : vector<1x64xf32> to vector<1x16xf32>
    %195 = tpu.concatenate %191, %192, %193, %194 in 1 : vector<1x16xf32>, vector<1x16xf32>, vector<1x16xf32>, vector<1x16xf32> -> vector<1x64xf32>
    %196 = vector.extract_strided_slice %157 {offsets = [0, 48], sizes = [1, 16], strides = [1, 1]} : vector<1x64xf32> to vector<1x16xf32>
    %197 = vector.extract_strided_slice %158 {offsets = [0, 48], sizes = [1, 16], strides = [1, 1]} : vector<1x64xf32> to vector<1x16xf32>
    %198 = vector.extract_strided_slice %159 {offsets = [0, 48], sizes = [1, 16], strides = [1, 1]} : vector<1x64xf32> to vector<1x16xf32>
    %199 = vector.extract_strided_slice %160 {offsets = [0, 48], sizes = [1, 16], strides = [1, 1]} : vector<1x64xf32> to vector<1x16xf32>
    %200 = tpu.concatenate %196, %197, %198, %199 in 1 : vector<1x16xf32>, vector<1x16xf32>, vector<1x16xf32>, vector<1x16xf32> -> vector<1x64xf32>
    %201 = tpu.concatenate %165, %170, %175, %180, %185, %190, %195, %200 in 0 : vector<1x64xf32>, vector<1x64xf32>, vector<1x64xf32>, vector<1x64xf32>, vector<1x64xf32>, vector<1x64xf32>, vector<1x64xf32>, vector<1x64xf32> -> vector<8x64xf32>
    %c0_42 = arith.constant 0 : index
    %c0_43 = arith.constant 0 : index
    %202 = vector.load %arg7[%c0_42, %c0_43] : memref<64x128xf32, #tpu.memory_space<vmem>>, vector<64x128xf32>
    %cst_44 = arith.constant dense<0.000000e+00> : vector<8x128xf32>
    %203 = tpu.matmul %201, %202, %cst_44 {dimension_numbers = #tpu.dot_dimension_numbers<[1], [0], [0], [1], [0, 0, 1, 1], [], []>} : vector<8x64xf32>, vector<64x128xf32>, vector<8x128xf32> -> vector<8x128xf32>
    %c0_45 = arith.constant 0 : index
    %c0_46 = arith.constant 0 : index
    %204 = vector.load %arg9[%c0_45, %c0_46] : memref<1x128xf32, #tpu.memory_space<vmem>>, vector<1x128xf32>
    %205 = vector.broadcast %204 : vector<1x128xf32> to vector<8x128xf32>
    %206 = arith.addf %203, %205 : vector<8x128xf32>
    %c0_47 = arith.constant 0 : index
    %c0_48 = arith.constant 0 : index
    %207 = vector.load %arg8[%c0_47, %c0_48] : memref<32x128xf32, #tpu.memory_space<vmem>>, vector<32x128xf32>
    %cst_49 = arith.constant 0.000000e+00 : f32
    %208 = vector.broadcast %cst_49 : f32 to vector<2x32xf32>
    %cst_50 = arith.constant 0.000000e+00 : f32
    %209 = vector.broadcast %cst_50 : f32 to vector<2x32xf32>
    %210 = vector.extract_strided_slice %206 {offsets = [0, 0], sizes = [2, 128], strides = [1, 1]} : vector<8x128xf32> to vector<2x128xf32>
    %cst_51 = arith.constant dense<0.000000e+00> : vector<2x128xf32>
    %211 = tpu.matmul %208, %207, %cst_51 {dimension_numbers = #tpu.dot_dimension_numbers<[1], [0], [0], [1], [0, 0, 1, 1], [], []>} : vector<2x32xf32>, vector<32x128xf32>, vector<2x128xf32> -> vector<2x128xf32>
    %212 = arith.addf %210, %211 : vector<2x128xf32>
    %213 = vector.extract_strided_slice %212 {offsets = [0, 0], sizes = [2, 32], strides = [1, 1]} : vector<2x128xf32> to vector<2x32xf32>
    %214 = arith.negf %213 : vector<2x32xf32>
    %215 = math.exp %214 : vector<2x32xf32>
    %cst_52 = arith.constant 1.000000e+00 : f32
    %216 = vector.broadcast %cst_52 : f32 to vector<2x32xf32>
    %217 = arith.addf %216, %215 : vector<2x32xf32>
    %218 = arith.divf %216, %217 : vector<2x32xf32>
    %219 = vector.extract_strided_slice %212 {offsets = [0, 32], sizes = [2, 32], strides = [1, 1]} : vector<2x128xf32> to vector<2x32xf32>
    %220 = arith.negf %219 : vector<2x32xf32>
    %221 = math.exp %220 : vector<2x32xf32>
    %cst_53 = arith.constant 1.000000e+00 : f32
    %222 = vector.broadcast %cst_53 : f32 to vector<2x32xf32>
    %223 = arith.addf %222, %221 : vector<2x32xf32>
    %224 = arith.divf %222, %223 : vector<2x32xf32>
    %225 = vector.extract_strided_slice %212 {offsets = [0, 64], sizes = [2, 32], strides = [1, 1]} : vector<2x128xf32> to vector<2x32xf32>
    %226 = math.tanh %225 : vector<2x32xf32>
    %227 = vector.extract_strided_slice %212 {offsets = [0, 96], sizes = [2, 32], strides = [1, 1]} : vector<2x128xf32> to vector<2x32xf32>
    %228 = arith.negf %227 : vector<2x32xf32>
    %229 = math.exp %228 : vector<2x32xf32>
    %cst_54 = arith.constant 1.000000e+00 : f32
    %230 = vector.broadcast %cst_54 : f32 to vector<2x32xf32>
    %231 = arith.addf %230, %229 : vector<2x32xf32>
    %232 = arith.divf %230, %231 : vector<2x32xf32>
    %233 = arith.mulf %224, %209 : vector<2x32xf32>
    %234 = arith.mulf %218, %226 : vector<2x32xf32>
    %235 = arith.addf %233, %234 : vector<2x32xf32>
    %236 = math.tanh %235 : vector<2x32xf32>
    %237 = arith.mulf %232, %236 : vector<2x32xf32>
    %238 = vector.extract_strided_slice %206 {offsets = [2, 0], sizes = [2, 128], strides = [1, 1]} : vector<8x128xf32> to vector<2x128xf32>
    %cst_55 = arith.constant dense<0.000000e+00> : vector<2x128xf32>
    %239 = tpu.matmul %237, %207, %cst_55 {dimension_numbers = #tpu.dot_dimension_numbers<[1], [0], [0], [1], [0, 0, 1, 1], [], []>} : vector<2x32xf32>, vector<32x128xf32>, vector<2x128xf32> -> vector<2x128xf32>
    %240 = arith.addf %238, %239 : vector<2x128xf32>
    %241 = vector.extract_strided_slice %240 {offsets = [0, 0], sizes = [2, 32], strides = [1, 1]} : vector<2x128xf32> to vector<2x32xf32>
    %242 = arith.negf %241 : vector<2x32xf32>
    %243 = math.exp %242 : vector<2x32xf32>
    %cst_56 = arith.constant 1.000000e+00 : f32
    %244 = vector.broadcast %cst_56 : f32 to vector<2x32xf32>
    %245 = arith.addf %244, %243 : vector<2x32xf32>
    %246 = arith.divf %244, %245 : vector<2x32xf32>
    %247 = vector.extract_strided_slice %240 {offsets = [0, 32], sizes = [2, 32], strides = [1, 1]} : vector<2x128xf32> to vector<2x32xf32>
    %248 = arith.negf %247 : vector<2x32xf32>
    %249 = math.exp %248 : vector<2x32xf32>
    %cst_57 = arith.constant 1.000000e+00 : f32
    %250 = vector.broadcast %cst_57 : f32 to vector<2x32xf32>
    %251 = arith.addf %250, %249 : vector<2x32xf32>
    %252 = arith.divf %250, %251 : vector<2x32xf32>
    %253 = vector.extract_strided_slice %240 {offsets = [0, 64], sizes = [2, 32], strides = [1, 1]} : vector<2x128xf32> to vector<2x32xf32>
    %254 = math.tanh %253 : vector<2x32xf32>
    %255 = vector.extract_strided_slice %240 {offsets = [0, 96], sizes = [2, 32], strides = [1, 1]} : vector<2x128xf32> to vector<2x32xf32>
    %256 = arith.negf %255 : vector<2x32xf32>
    %257 = math.exp %256 : vector<2x32xf32>
    %cst_58 = arith.constant 1.000000e+00 : f32
    %258 = vector.broadcast %cst_58 : f32 to vector<2x32xf32>
    %259 = arith.addf %258, %257 : vector<2x32xf32>
    %260 = arith.divf %258, %259 : vector<2x32xf32>
    %261 = arith.mulf %252, %235 : vector<2x32xf32>
    %262 = arith.mulf %246, %254 : vector<2x32xf32>
    %263 = arith.addf %261, %262 : vector<2x32xf32>
    %264 = math.tanh %263 : vector<2x32xf32>
    %265 = arith.mulf %260, %264 : vector<2x32xf32>
    %266 = vector.extract_strided_slice %206 {offsets = [4, 0], sizes = [2, 128], strides = [1, 1]} : vector<8x128xf32> to vector<2x128xf32>
    %cst_59 = arith.constant dense<0.000000e+00> : vector<2x128xf32>
    %267 = tpu.matmul %265, %207, %cst_59 {dimension_numbers = #tpu.dot_dimension_numbers<[1], [0], [0], [1], [0, 0, 1, 1], [], []>} : vector<2x32xf32>, vector<32x128xf32>, vector<2x128xf32> -> vector<2x128xf32>
    %268 = arith.addf %266, %267 : vector<2x128xf32>
    %269 = vector.extract_strided_slice %268 {offsets = [0, 0], sizes = [2, 32], strides = [1, 1]} : vector<2x128xf32> to vector<2x32xf32>
    %270 = arith.negf %269 : vector<2x32xf32>
    %271 = math.exp %270 : vector<2x32xf32>
    %cst_60 = arith.constant 1.000000e+00 : f32
    %272 = vector.broadcast %cst_60 : f32 to vector<2x32xf32>
    %273 = arith.addf %272, %271 : vector<2x32xf32>
    %274 = arith.divf %272, %273 : vector<2x32xf32>
    %275 = vector.extract_strided_slice %268 {offsets = [0, 32], sizes = [2, 32], strides = [1, 1]} : vector<2x128xf32> to vector<2x32xf32>
    %276 = arith.negf %275 : vector<2x32xf32>
    %277 = math.exp %276 : vector<2x32xf32>
    %cst_61 = arith.constant 1.000000e+00 : f32
    %278 = vector.broadcast %cst_61 : f32 to vector<2x32xf32>
    %279 = arith.addf %278, %277 : vector<2x32xf32>
    %280 = arith.divf %278, %279 : vector<2x32xf32>
    %281 = vector.extract_strided_slice %268 {offsets = [0, 64], sizes = [2, 32], strides = [1, 1]} : vector<2x128xf32> to vector<2x32xf32>
    %282 = math.tanh %281 : vector<2x32xf32>
    %283 = vector.extract_strided_slice %268 {offsets = [0, 96], sizes = [2, 32], strides = [1, 1]} : vector<2x128xf32> to vector<2x32xf32>
    %284 = arith.negf %283 : vector<2x32xf32>
    %285 = math.exp %284 : vector<2x32xf32>
    %cst_62 = arith.constant 1.000000e+00 : f32
    %286 = vector.broadcast %cst_62 : f32 to vector<2x32xf32>
    %287 = arith.addf %286, %285 : vector<2x32xf32>
    %288 = arith.divf %286, %287 : vector<2x32xf32>
    %289 = arith.mulf %280, %263 : vector<2x32xf32>
    %290 = arith.mulf %274, %282 : vector<2x32xf32>
    %291 = arith.addf %289, %290 : vector<2x32xf32>
    %292 = math.tanh %291 : vector<2x32xf32>
    %293 = arith.mulf %288, %292 : vector<2x32xf32>
    %294 = vector.extract_strided_slice %206 {offsets = [6, 0], sizes = [2, 128], strides = [1, 1]} : vector<8x128xf32> to vector<2x128xf32>
    %cst_63 = arith.constant dense<0.000000e+00> : vector<2x128xf32>
    %295 = tpu.matmul %293, %207, %cst_63 {dimension_numbers = #tpu.dot_dimension_numbers<[1], [0], [0], [1], [0, 0, 1, 1], [], []>} : vector<2x32xf32>, vector<32x128xf32>, vector<2x128xf32> -> vector<2x128xf32>
    %296 = arith.addf %294, %295 : vector<2x128xf32>
    %297 = vector.extract_strided_slice %296 {offsets = [0, 0], sizes = [2, 32], strides = [1, 1]} : vector<2x128xf32> to vector<2x32xf32>
    %298 = arith.negf %297 : vector<2x32xf32>
    %299 = math.exp %298 : vector<2x32xf32>
    %cst_64 = arith.constant 1.000000e+00 : f32
    %300 = vector.broadcast %cst_64 : f32 to vector<2x32xf32>
    %301 = arith.addf %300, %299 : vector<2x32xf32>
    %302 = arith.divf %300, %301 : vector<2x32xf32>
    %303 = vector.extract_strided_slice %296 {offsets = [0, 32], sizes = [2, 32], strides = [1, 1]} : vector<2x128xf32> to vector<2x32xf32>
    %304 = arith.negf %303 : vector<2x32xf32>
    %305 = math.exp %304 : vector<2x32xf32>
    %cst_65 = arith.constant 1.000000e+00 : f32
    %306 = vector.broadcast %cst_65 : f32 to vector<2x32xf32>
    %307 = arith.addf %306, %305 : vector<2x32xf32>
    %308 = arith.divf %306, %307 : vector<2x32xf32>
    %309 = vector.extract_strided_slice %296 {offsets = [0, 64], sizes = [2, 32], strides = [1, 1]} : vector<2x128xf32> to vector<2x32xf32>
    %310 = math.tanh %309 : vector<2x32xf32>
    %311 = vector.extract_strided_slice %296 {offsets = [0, 96], sizes = [2, 32], strides = [1, 1]} : vector<2x128xf32> to vector<2x32xf32>
    %312 = arith.negf %311 : vector<2x32xf32>
    %313 = math.exp %312 : vector<2x32xf32>
    %cst_66 = arith.constant 1.000000e+00 : f32
    %314 = vector.broadcast %cst_66 : f32 to vector<2x32xf32>
    %315 = arith.addf %314, %313 : vector<2x32xf32>
    %316 = arith.divf %314, %315 : vector<2x32xf32>
    %317 = arith.mulf %308, %291 : vector<2x32xf32>
    %318 = arith.mulf %302, %310 : vector<2x32xf32>
    %319 = arith.addf %317, %318 : vector<2x32xf32>
    %320 = math.tanh %319 : vector<2x32xf32>
    %321 = arith.mulf %316, %320 : vector<2x32xf32>
    %c0_67 = arith.constant 0 : index
    %c0_68 = arith.constant 0 : index
    %322 = vector.load %arg10[%c0_67, %c0_68] : memref<32x5xf32, #tpu.memory_space<vmem>>, vector<32x5xf32>
    %cst_69 = arith.constant dense<0.000000e+00> : vector<2x5xf32>
    %323 = tpu.matmul %321, %322, %cst_69 {dimension_numbers = #tpu.dot_dimension_numbers<[1], [0], [0], [1], [0, 0, 1, 1], [], []>} : vector<2x32xf32>, vector<32x5xf32>, vector<2x5xf32> -> vector<2x5xf32>
    %c0_70 = arith.constant 0 : index
    %c0_71 = arith.constant 0 : index
    %324 = vector.load %arg11[%c0_70, %c0_71] : memref<1x5xf32, #tpu.memory_space<vmem>>, vector<1x5xf32>
    %325 = vector.broadcast %324 : vector<1x5xf32> to vector<2x5xf32>
    %326 = arith.addf %323, %325 : vector<2x5xf32>
    %c0_72 = arith.constant 0 : index
    %c0_73 = arith.constant 0 : index
    %327 = vector.load %arg12[%c0_72, %c0_73] : memref<2x5xf32, #tpu.memory_space<vmem>>, vector<2x5xf32>
    tpu.vector_store %arg12[%c0_72, %c0_73], %326 {strides = array<i32>} : memref<2x5xf32, #tpu.memory_space<vmem>>, vector<2x5xf32>,
    return
  }
}

</mosaic_0001>

<llo_original>
// kernel: cnn_lstm_forward.1
$region0: #{cnn_lstm_forward.1}
  #allocation0 [shape = 'u32[]', space=smem, size = 0x4, offset = 0x4, fixed_abs, tag = 'smem constant byte address 0x4 - core index']
  #allocation1 [shape = 'u32[144,128]{1,0:T(1,128)}', space=vmem, size = 0x12000, scoped, tag = 'internal scratch']
  %s0 = inlined_call_operand.vmem [shape: f32[2,16,1], index: 0, kind: input, shape index: {}]
  %s1 = inlined_call_operand.hbm [shape: f32[6,32], index: 1, kind: input, shape index: {}]
  %s2 = inlined_call_operand.vmem [shape: f32[1,32], index: 2, kind: input, shape index: {}]
  %s3 = inlined_call_operand.vmem [shape: f32[1,32], index: 3, kind: input, shape index: {}]
  %s4 = inlined_call_operand.vmem [shape: f32[192,64], index: 4, kind: input, shape index: {}]
  %s5 = inlined_call_operand.vmem [shape: f32[1,64], index: 5, kind: input, shape index: {}]
  %s6 = inlined_call_operand.vmem [shape: f32[1,64], index: 6, kind: input, shape index: {}]
  %s7 = inlined_call_operand.vmem [shape: f32[64,128], index: 7, kind: input, shape index: {}]
  %s8 = inlined_call_operand.vmem [shape: f32[32,128], index: 8, kind: input, shape index: {}]
  %s9 = inlined_call_operand.vmem [shape: f32[1,128], index: 9, kind: input, shape index: {}]
  %s10 = inlined_call_operand.vmem [shape: f32[32,5], index: 10, kind: input, shape index: {}]
  %s11 = inlined_call_operand.hbm [shape: f32[1,5], index: 11, kind: input, shape index: {}]
  %s12 = inlined_call_operand.hbm [shape: f32[2,5], index: 12, kind: output, shape index: {}]
  %s13 = sld [smem:[#allocation0]]
  $region66: #{cnn_lstm_forward.1} parent=0
    _
  %s15 = ssub.s32 1, %s13
  %s16 = scalar_select 0, %s15, %s13
  $region1: #{cnn_lstm_forward.1} parent=0
    #allocation2 [shape = 'u8[4096]{0}', space=vmem, size = 0x1000, scoped, tag = 'input window, operand 1, single buffered']
    #allocation3 [shape = 's32[1]{0}', space=sflag, size = 0x4, scoped, tag = 'scoped memory for cnn_lstm_forward.1']
    #allocation4 [shape = 's32[1]{0}', space=sflag, size = 0x4, scoped, tag = 'scoped memory for cnn_lstm_forward.1']
    #allocation5 [shape = 'u8[512]{0}', space=vmem, size = 0x400, scoped, tag = 'input window, operand 11, single buffered']
    #allocation6 [shape = 's32[1]{0}', space=sflag, size = 0x4, scoped, tag = 'scoped memory for cnn_lstm_forward.1']
    #allocation7 [shape = 'u8[1024]{0}', space=vmem, size = 0x400, scoped, tag = 'output window, operand 0, single buffered']
    %17 = vsyncpa [#allocation3], 0
    %18 = vsyncpa [#allocation6], 0
    %19 = vsyncpa [#allocation4], 0
    // Predicated region
    $region2: #{cnn_lstm_forward.1} parent=1 // pred_check
      _
    $region3: #{cnn_lstm_forward.1} parent=1 // pred_check_branch
      %21 = sbr.rel (0) target = $region5
    $region4: #{cnn_lstm_forward.1} parent=1 // pred_region
      _
    $region5: #{cnn_lstm_forward.1} parent=1 // pred_fallthru
      _
    // Predicated region
    $region6: #{cnn_lstm_forward.1} parent=1 // pred_check
      _
    $region7: #{cnn_lstm_forward.1} parent=1 // pred_check_branch
      %23 = sbr.rel (0) target = $region9
    $region8: #{cnn_lstm_forward.1} parent=1 // pred_region
      %s25 = ssub.s32 128, 128
      %26 = vsyncadd [#allocation3], %s25
      %s28 = sshll.u32 [#allocation2], 4
      %s29 = int_to_ptr.vmem [resolvable:$true] %s28
      %31 = dma.hbm_to_vmem [thread:$0]  %s1, 128, %s29, [#allocation3]
    $region9: #{cnn_lstm_forward.1} parent=1 // pred_fallthru
      _
    // Predicated region
    $region10: #{cnn_lstm_forward.1} parent=1 // pred_check
      _
    $region11: #{cnn_lstm_forward.1} parent=1 // pred_check_branch
      %33 = sbr.rel (0) target = $region13
    $region12: #{cnn_lstm_forward.1} parent=1 // pred_region
      _
    $region13: #{cnn_lstm_forward.1} parent=1 // pred_fallthru
      _
    // Predicated region
    $region14: #{cnn_lstm_forward.1} parent=1 // pred_check
      _
    $region15: #{cnn_lstm_forward.1} parent=1 // pred_check_branch
      %35 = sbr.rel (0) target = $region17
    $region16: #{cnn_lstm_forward.1} parent=1 // pred_region
      _
    $region17: #{cnn_lstm_forward.1} parent=1 // pred_fallthru
      _
    // Predicated region
    $region18: #{cnn_lstm_forward.1} parent=1 // pred_check
      _
    $region19: #{cnn_lstm_forward.1} parent=1 // pred_check_branch
      %37 = sbr.rel (0) target = $region21
    $region20: #{cnn_lstm_forward.1} parent=1 // pred_region
      _
    $region21: #{cnn_lstm_forward.1} parent=1 // pred_fallthru
      _
    // Predicated region
    $region22: #{cnn_lstm_forward.1} parent=1 // pred_check
      _
    $region23: #{cnn_lstm_forward.1} parent=1 // pred_check_branch
      %39 = sbr.rel (0) target = $region25
    $region24: #{cnn_lstm_forward.1} parent=1 // pred_region
      _
    $region25: #{cnn_lstm_forward.1} parent=1 // pred_fallthru
      _
    // Predicated region
    $region26: #{cnn_lstm_forward.1} parent=1 // pred_check
      _
    $region27: #{cnn_lstm_forward.1} parent=1 // pred_check_branch
      %41 = sbr.rel (0) target = $region29
    $region28: #{cnn_lstm_forward.1} parent=1 // pred_region
      _
    $region29: #{cnn_lstm_forward.1} parent=1 // pred_fallthru
      _
    // Predicated region
    $region30: #{cnn_lstm_forward.1} parent=1 // pred_check
      _
    $region31: #{cnn_lstm_forward.1} parent=1 // pred_check_branch
      %43 = sbr.rel (0) target = $region33
    $region32: #{cnn_lstm_forward.1} parent=1 // pred_region
      _
    $region33: #{cnn_lstm_forward.1} parent=1 // pred_fallthru
      _
    // Predicated region
    $region34: #{cnn_lstm_forward.1} parent=1 // pred_check
      _
    $region35: #{cnn_lstm_forward.1} parent=1 // pred_check_branch
      %45 = sbr.rel (0) target = $region37
    $region36: #{cnn_lstm_forward.1} parent=1 // pred_region
      _
    $region37: #{cnn_lstm_forward.1} parent=1 // pred_fallthru
      _
    // Predicated region
    $region38: #{cnn_lstm_forward.1} parent=1 // pred_check
      _
    $region39: #{cnn_lstm_forward.1} parent=1 // pred_check_branch
      %47 = sbr.rel (0) target = $region41
    $region40: #{cnn_lstm_forward.1} parent=1 // pred_region
      _
    $region41: #{cnn_lstm_forward.1} parent=1 // pred_fallthru
      _
    // Predicated region
    $region42: #{cnn_lstm_forward.1} parent=1 // pred_check
      _
    $region43: #{cnn_lstm_forward.1} parent=1 // pred_check_branch
      %49 = sbr.rel (0) target = $region45
    $region44: #{cnn_lstm_forward.1} parent=1 // pred_region
      _
    $region45: #{cnn_lstm_forward.1} parent=1 // pred_fallthru
      _
    // Predicated region
    $region46: #{cnn_lstm_forward.1} parent=1 // pred_check
      _
    $region47: #{cnn_lstm_forward.1} parent=1 // pred_check_branch
      %51 = sbr.rel (0) target = $region49
    $region48: #{cnn_lstm_forward.1} parent=1 // pred_region
      %s53 = ssub.s32 16, 16
      %54 = vsyncadd [#allocation6], %s53
      %s56 = sshll.u32 [#allocation5], 4
      %s57 = int_to_ptr.vmem [resolvable:$true] %s56
      %59 = dma.hbm_to_vmem [thread:$0]  %s11, 16, %s57, [#allocation6]
    $region49: #{cnn_lstm_forward.1} parent=1 // pred_fallthru
      _
    // Predicated region
    $region50: #{cnn_lstm_forward.1} parent=1 // pred_check
      _
    $region51: #{cnn_lstm_forward.1} parent=1 // pred_check_branch
      %61 = sbr.rel (0) target = $region53
    $region52: #{cnn_lstm_forward.1} parent=1 // pred_region
      %62 = dma.done [#allocation3], 128
    $region53: #{cnn_lstm_forward.1} parent=1 // pred_fallthru
      _
    // Predicated region
    $region54: #{cnn_lstm_forward.1} parent=1 // pred_check
      _
    $region55: #{cnn_lstm_forward.1} parent=1 // pred_check_branch
      %64 = sbr.rel (0) target = $region57
    $region56: #{cnn_lstm_forward.1} parent=1 // pred_region
      %65 = dma.done [#allocation6], 16
    $region57: #{cnn_lstm_forward.1} parent=1 // pred_fallthru
      _
    %v66 = vld [vmem:[%s0] sm:$0xff]
    %v67 = vld [vmem:[%s0 + $0x8] sm:$0xff]
    %v68 = vld [vmem:[%s0 + $0x10] sm:$0xff]
    %v69 = vld [vmem:[%s0 + $0x18] sm:$0xff]
    %vm74 = vcmask 1042432
    %v75 = vrot.slane %v66, 5
    %v76 = vrot.slane %v67, 5
    %v77 = vsel %vm74, %v75, %v76
    %v78 = vrot.slane %v68, 5
    %v79 = vrot.slane %v69, 5
    %v80 = vsel %vm74, %v78, %v79
    %v85 = vsel %vm74, 0.0, %v75
    %v86 = vsel %vm74, 0.0, %v78
    %v87 = vsel %vm74, %v76, 0.0
    %v88 = vsel %vm74, %v79, 0.0
    %v89 = vld [vmem:[#allocation2] sm:$0x1]
    %91 = vset.pattern.permute.xlu0 0
    %92 = vperm.xlu0 %91, %v85
    %v93 = vpop.permute.xlu0 %92
    %95 = vset.pattern.permute.xlu0 0
    %96 = vperm.xlu0 %95, %v77
    %v97 = vpop.permute.xlu0 %96
    %100 = vset.pattern.permute.xlu0 0
    %101 = vperm.xlu0 %100, %v87
    %v102 = vpop.permute.xlu0 %101
    %105 = vset.pattern.permute.xlu0 0
    %106 = vperm.xlu0 %105, %v86
    %v107 = vpop.permute.xlu0 %106
    %109 = vset.pattern.permute.xlu0 0
    %110 = vperm.xlu0 %109, %v80
    %v111 = vpop.permute.xlu0 %110
    %114 = vset.pattern.permute.xlu0 0
    %115 = vperm.xlu0 %114, %v88
    %v116 = vpop.permute.xlu0 %115
    %v118 = vlaneseq
    %v119 = vshrl.u32 %v118, 7
    %v120 = vsub.s32 0, %v119
    %v121 = vrot.slane %v89, %v120
    %v122 = vmul.f32 %v93, %v121
    %v123 = vmul.f32 %v97, %v121
    %v124 = vmul.f32 %v102, %v121
    %v125 = vmul.f32 %v107, %v121
    %v126 = vmul.f32 %v111, %v121
    %v127 = vmul.f32 %v116, %v121
    %v128 = vadd.f32 %v122, 0.0
    %v129 = vadd.f32 %v123, 0.0
    %v130 = vadd.f32 %v124, 0.0
    %v131 = vadd.f32 %v125, 0.0
    %v132 = vadd.f32 %v126, 0.0
    %v133 = vadd.f32 %v127, 0.0
    %v134 = vld [vmem:[#allocation2 + $0x1] sm:$0x1]
    %v135 = vlaneseq
    %v136 = vshrl.u32 %v135, 7
    %v137 = vsub.s32 0, %v136
    %v138 = vrot.slane %v134, %v137
    %v139 = vmul.f32 %v93, %v138
    %v140 = vmul.f32 %v97, %v138
    %v141 = vmul.f32 %v102, %v138
    %v142 = vmul.f32 %v107, %v138
    %v143 = vmul.f32 %v111, %v138
    %v144 = vmul.f32 %v116, %v138
    %vm151 = vcmask 1046528
    %v152 = vrot.slane %v139, 1
    %v153 = vrot.slane %v140, 1
    %v154 = vsel %vm151, %v152, %v153
    %v155 = vrot.slane %v141, 1
    %v156 = vsel %vm151, %v153, %v155
    %v157 = vrot.slane %v142, 1
    %v158 = vrot.slane %v143, 1
    %v159 = vsel %vm151, %v157, %v158
    %v160 = vrot.slane %v144, 1
    %v161 = vsel %vm151, %v158, %v160
    %v168 = vadd.f32 %v128, %v154
    %v169 = vadd.f32 %v129, %v156
    %v170 = vadd.f32 %v130, %v155
    %v171 = vadd.f32 %v131, %v159
    %v172 = vadd.f32 %v132, %v161
    %v173 = vadd.f32 %v133, %v160
    %v174 = vld [vmem:[#allocation2 + $0x2] sm:$0x1]
    %v175 = vlaneseq
    %v176 = vshrl.u32 %v175, 7
    %v177 = vsub.s32 0, %v176
    %v178 = vrot.slane %v174, %v177
    %v179 = vmul.f32 %v93, %v178
    %v180 = vmul.f32 %v97, %v178
    %v181 = vmul.f32 %v102, %v178
    %v182 = vmul.f32 %v107, %v178
    %v183 = vmul.f32 %v111, %v178
    %v184 = vmul.f32 %v116, %v178
    %vm191 = vcmask 1045504
    %v192 = vrot.slane %v179, 2
    %v193 = vrot.slane %v180, 2
    %v194 = vsel %vm191, %v192, %v193
    %v195 = vrot.slane %v181, 2
    %v196 = vsel %vm191, %v193, %v195
    %v197 = vrot.slane %v182, 2
    %v198 = vrot.slane %v183, 2
    %v199 = vsel %vm191, %v197, %v198
    %v200 = vrot.slane %v184, 2
    %v201 = vsel %vm191, %v198, %v200
    %v208 = vadd.f32 %v168, %v194
    %v209 = vadd.f32 %v169, %v196
    %v210 = vadd.f32 %v170, %v195
    %v211 = vadd.f32 %v171, %v199
    %v212 = vadd.f32 %v172, %v201
    %v213 = vadd.f32 %v173, %v200
    %v214 = vld [vmem:[#allocation2 + $0x3] sm:$0x1]
    %v215 = vlaneseq
    %v216 = vshrl.u32 %v215, 7
    %v217 = vsub.s32 0, %v216
    %v218 = vrot.slane %v214, %v217
    %v219 = vmul.f32 %v93, %v218
    %v220 = vmul.f32 %v97, %v218
    %v221 = vmul.f32 %v102, %v218
    %v222 = vmul.f32 %v107, %v218
    %v223 = vmul.f32 %v111, %v218
    %v224 = vmul.f32 %v116, %v218
    %vm231 = vcmask 1044480
    %v232 = vrot.slane %v219, 3
    %v233 = vrot.slane %v220, 3
    %v234 = vsel %vm231, %v232, %v233
    %v235 = vrot.slane %v221, 3
    %v236 = vsel %vm231, %v233, %v235
    %v237 = vrot.slane %v222, 3
    %v238 = vrot.slane %v223, 3
    %v239 = vsel %vm231, %v237, %v238
    %v240 = vrot.slane %v224, 3
    %v241 = vsel %vm231, %v238, %v240
    %v248 = vadd.f32 %v208, %v234
    %v249 = vadd.f32 %v209, %v236
    %v250 = vadd.f32 %v210, %v235
    %v251 = vadd.f32 %v211, %v239
    %v252 = vadd.f32 %v212, %v241
    %v253 = vadd.f32 %v213, %v240
    %v254 = vld [vmem:[#allocation2 + $0x4] sm:$0x1]
    %v255 = vlaneseq
    %v256 = vshrl.u32 %v255, 7
    %v257 = vsub.s32 0, %v256
    %v258 = vrot.slane %v254, %v257
    %v259 = vmul.f32 %v93, %v258
    %v260 = vmul.f32 %v97, %v258
    %v261 = vmul.f32 %v102, %v258
    %v262 = vmul.f32 %v107, %v258
    %v263 = vmul.f32 %v111, %v258
    %v264 = vmul.f32 %v116, %v258
    %vm271 = vcmask 1043456
    %v272 = vrot.slane %v259, 4
    %v273 = vrot.slane %v260, 4
    %v274 = vsel %vm271, %v272, %v273
    %v275 = vrot.slane %v261, 4
    %v276 = vsel %vm271, %v273, %v275
    %v277 = vrot.slane %v262, 4
    %v278 = vrot.slane %v263, 4
    %v279 = vsel %vm271, %v277, %v278
    %v280 = vrot.slane %v264, 4
    %v281 = vsel %vm271, %v278, %v280
    %v288 = vadd.f32 %v248, %v274
    %v289 = vadd.f32 %v249, %v276
    %v290 = vadd.f32 %v250, %v275
    %v291 = vadd.f32 %v251, %v279
    %v292 = vadd.f32 %v252, %v281
    %v293 = vadd.f32 %v253, %v280
    %v294 = vld [vmem:[#allocation2 + $0x5] sm:$0x1]
    %v295 = vlaneseq
    %v296 = vshrl.u32 %v295, 7
    %v297 = vsub.s32 0, %v296
    %v298 = vrot.slane %v294, %v297
    %v299 = vmul.f32 %v93, %v298
    %v300 = vmul.f32 %v97, %v298
    %v301 = vmul.f32 %v102, %v298
    %v302 = vmul.f32 %v107, %v298
    %v303 = vmul.f32 %v111, %v298
    %v304 = vmul.f32 %v116, %v298
    %v311 = vrot.slane %v299, 5
    %v312 = vrot.slane %v300, 5
    %v313 = vsel %vm74, %v311, %v312
    %v314 = vrot.slane %v301, 5
    %v315 = vsel %vm74, %v312, %v314
    %v316 = vrot.slane %v302, 5
    %v317 = vrot.slane %v303, 5
    %v318 = vsel %vm74, %v316, %v317
    %v319 = vrot.slane %v304, 5
    %v320 = vsel %vm74, %v317, %v319
    %v327 = vadd.f32 %v288, %v313
    %v328 = vadd.f32 %v289, %v315
    %v329 = vadd.f32 %v290, %v314
    %v330 = vadd.f32 %v291, %v318
    %v331 = vadd.f32 %v292, %v320
    %v332 = vadd.f32 %v293, %v319
    %vm333 = vcmask 261120
    %v334 = vsel %vm333, %v327, 0.0
    %v335 = vsel %vm333, %v330, 0.0
    %v336 = vadd.f32 %v334, %v335
    %v337 = vsel %vm333, %v328, 0.0
    %v338 = vsel %vm333, %v331, 0.0
    %v339 = vadd.f32 %v337, %v338
    %vm340 = vcmask 253952
    %v341 = vsel %vm340, %v329, 0.0
    %v342 = vsel %vm340, %v332, 0.0
    %v343 = vadd.f32 %v341, %v342
    %v344 = vsel %vm333, %v336, 0.0
    %v345 = vsel %vm333, %v339, 0.0
    %v346 = vadd.f32 %v344, %v345
    %v347 = vsel %vm340, %v343, 0.0
    %v348 = vadd.f32 %v346, %v347
    %v349 = vrot.slane %v348, 4
    %v350 = vadd.f32 %v348, %v349
    %v351 = vrot.slane %v350, 2
    %v352 = vadd.f32 %v350, %v351
    %v353 = vrot.slane %v352, 1
    %v354 = vadd.f32 %v352, %v353
    %v355 = vrcp.pop 34.0
    %v356 = vmul.f32 %v354, %v355
    %v357 = vsub.f32 %v327, %v356
    %v358 = vsub.f32 %v328, %v356
    %v359 = vsub.f32 %v329, %v356
    %v360 = vsub.f32 %v330, %v356
    %v361 = vsub.f32 %v331, %v356
    %v362 = vsub.f32 %v332, %v356
    %v363 = vmul.f32 %v357, %v357
    %v364 = vmul.f32 %v358, %v358
    %v365 = vmul.f32 %v359, %v359
    %v366 = vmul.f32 %v360, %v360
    %v367 = vmul.f32 %v361, %v361
    %v368 = vmul.f32 %v362, %v362
    %v369 = vsel %vm333, %v363, 0.0
    %v370 = vsel %vm333, %v366, 0.0
    %v371 = vadd.f32 %v369, %v370
    %v372 = vsel %vm333, %v364, 0.0
    %v373 = vsel %vm333, %v367, 0.0
    %v374 = vadd.f32 %v372, %v373
    %v375 = vsel %vm340, %v365, 0.0
    %v376 = vsel %vm340, %v368, 0.0
    %v377 = vadd.f32 %v375, %v376
    %v378 = vsel %vm333, %v371, 0.0
    %v379 = vsel %vm333, %v374, 0.0
    %v380 = vadd.f32 %v378, %v379
    %v381 = vsel %vm340, %v377, 0.0
    %v382 = vadd.f32 %v380, %v381
    %v383 = vrot.slane %v382, 4
    %v384 = vadd.f32 %v382, %v383
    %v385 = vrot.slane %v384, 2
    %v386 = vadd.f32 %v384, %v385
    %v387 = vrot.slane %v386, 1
    %v388 = vadd.f32 %v386, %v387
    %v389 = vmul.f32 %v388, %v355
    %v390 = vld [vmem:[%s2] sm:$0x1]
    %v391 = vadd.f32 %v389, 1e-05
    %v392 = vrsqrt.pop %v391
    %v393 = vmul.f32 %v390, %v392
    %v394 = vld [vmem:[%s3] sm:$0x1]
    %v395 = vmul.f32 %v356, %v393
    %v396 = vsub.f32 %v394, %v395
    %v398 = vlaneseq
    %v399 = vshrl.u32 %v398, 7
    %v400 = vsub.s32 0, %v399
    %v401 = vrot.slane %v393, %v400
    %v403 = vmul.f32 %v327, %v401
    %v404 = vmul.f32 %v328, %v401
    %v405 = vmul.f32 %v330, %v401
    %v406 = vmul.f32 %v331, %v401
    %v408 = vlaneseq
    %v409 = vshrl.u32 %v408, 7
    %v410 = vsub.s32 0, %v409
    %v411 = vrot.slane %v396, %v410
    %v413 = vadd.f32 %v403, %v411
    %v414 = vadd.f32 %v404, %v411
    %v415 = vadd.f32 %v405, %v411
    %v416 = vadd.f32 %v406, %v411
    %v417 = vmax.f32 %v413, 0.0
    %v418 = vmax.f32 %v414, 0.0
    %v419 = vmax.f32 %v415, 0.0
    %v420 = vmax.f32 %v416, 0.0
    %v425 = vrot.slane %v417, 1
    %v426 = vrot.slane %v418, 1
    %v427 = vsel %vm151, %v425, %v426
    %v428 = vrot.slane %v419, 1
    %v429 = vrot.slane %v420, 1
    %v430 = vsel %vm151, %v428, %v429
    %v435 = vmax.f32 %v417, %v427
    %v436 = vmax.f32 %v418, %v426
    %v437 = vmax.f32 %v419, %v430
    %v438 = vmax.f32 %v420, %v429
    %v441 = vrot.slane %v435, 5
    %v442 = vrot.slane %v437, 5
    %v445 = vrot.slane %v435, 6
    %v446 = vrot.slane %v437, 6
    %v449 = vrot.slane %v435, 7
    %v450 = vrot.slane %v437, 7
    %v455 = vrot.slane %v436, 1
    %v456 = vrot.slane %v438, 1
    %v459 = vrot.slane %v436, 2
    %v460 = vrot.slane %v438, 2
    %v463 = vrot.slane %v436, 3
    %v464 = vrot.slane %v438, 3
    %v467 = vrot.slane %v436, 4
    %v468 = vrot.slane %v438, 4
    %v471 = vsel %vm74, 0.0, %v441
    %v472 = vsel %vm74, 0.0, %v442
    %v473 = vsel %vm271, %v471, %v445
    %v474 = vsel %vm271, %v472, %v446
    %v475 = vsel %vm231, %v473, %v449
    %v476 = vsel %vm231, %v474, %v450
    %v477 = vsel %vm191, %v475, %v435
    %v478 = vsel %vm191, %v476, %v437
    %v479 = vsel %vm151, %v477, %v455
    %v480 = vsel %vm151, %v478, %v456
    %vm481 = vcmask 1040384
    %v482 = vsel %vm481, %v459, %v463
    %v483 = vsel %vm481, %v460, %v464
    %vm484 = vcmask 1041408
    %v485 = vsel %vm484, %v482, %v467
    %v486 = vsel %vm484, %v483, %v468
    %v487 = vsel %vm74, %v485, 0.0
    %v488 = vsel %vm74, %v486, 0.0
    %v493 = vrot.slane %v479, 1
    %v494 = vrot.slane %v487, 1
    %v495 = vsel %vm151, %v493, %v494
    %v496 = vrot.slane %v480, 1
    %v497 = vrot.slane %v488, 1
    %v498 = vsel %vm151, %v496, %v497
    %499 = vrot.lane.b32.xlu0 %v495, 32
    %v500 = vpop.permute.xlu0 %499
    %501 = vrot.lane.b32.xlu0 %v494, 32
    %v502 = vpop.permute.xlu0 %501
    %503 = vrot.lane.b32.xlu0 %v498, 32
    %v504 = vpop.permute.xlu0 %503
    %505 = vrot.lane.b32.xlu0 %v497, 32
    %v506 = vpop.permute.xlu0 %505
    %v511 = vrot.slane %v479, 2
    %v512 = vrot.slane %v487, 2
    %v513 = vsel %vm191, %v511, %v512
    %v514 = vrot.slane %v480, 2
    %v515 = vrot.slane %v488, 2
    %v516 = vsel %vm191, %v514, %v515
    %517 = vrot.lane.b32.xlu0 %v513, 64
    %v518 = vpop.permute.xlu0 %517
    %519 = vrot.lane.b32.xlu0 %v512, 64
    %v520 = vpop.permute.xlu0 %519
    %521 = vrot.lane.b32.xlu0 %v516, 64
    %v522 = vpop.permute.xlu0 %521
    %523 = vrot.lane.b32.xlu0 %v515, 64
    %v524 = vpop.permute.xlu0 %523
    %v529 = vrot.slane %v479, 3
    %v530 = vrot.slane %v487, 3
    %v531 = vsel %vm231, %v529, %v530
    %v532 = vrot.slane %v480, 3
    %v533 = vrot.slane %v488, 3
    %v534 = vsel %vm231, %v532, %v533
    %535 = vrot.lane.b32.xlu0 %v531, 96
    %v536 = vpop.permute.xlu0 %535
    %537 = vrot.lane.b32.xlu0 %v530, 96
    %v538 = vpop.permute.xlu0 %537
    %539 = vrot.lane.b32.xlu0 %v534, 96
    %v540 = vpop.permute.xlu0 %539
    %541 = vrot.lane.b32.xlu0 %v533, 96
    %v542 = vpop.permute.xlu0 %541
    %v547 = vrot.slane %v479, 4
    %v548 = vrot.slane %v487, 4
    %v549 = vsel %vm271, %v547, %v548
    %v550 = vrot.slane %v480, 4
    %v551 = vrot.slane %v488, 4
    %v552 = vsel %vm271, %v550, %v551
    %v557 = vrot.slane %v479, 5
    %v558 = vrot.slane %v487, 5
    %v559 = vsel %vm74, %v557, %v558
    %v560 = vrot.slane %v480, 5
    %v561 = vrot.slane %v488, 5
    %v562 = vsel %vm74, %v560, %v561
    %563 = vrot.lane.b32.xlu0 %v559, 32
    %v564 = vpop.permute.xlu0 %563
    %565 = vrot.lane.b32.xlu0 %v558, 32
    %v566 = vpop.permute.xlu0 %565
    %567 = vrot.lane.b32.xlu0 %v562, 32
    %v568 = vpop.permute.xlu0 %567
    %569 = vrot.lane.b32.xlu0 %v561, 32
    %v570 = vpop.permute.xlu0 %569
    %v575 = vsel %vm333, %v479, %v500
    %v576 = vsel %vm333, %v487, %v502
    %v577 = vsel %vm333, %v480, %v504
    %v578 = vsel %vm333, %v488, %v506
    %vm579 = vcmask 523264
    %v580 = vsel %vm579, %v575, %v518
    %v581 = vsel %vm579, %v576, %v520
    %v582 = vsel %vm579, %v577, %v522
    %v583 = vsel %vm579, %v578, %v524
    %vm584 = vcmask 785408
    %v585 = vsel %vm584, %v580, %v536
    %v586 = vsel %vm584, %v581, %v538
    %v587 = vsel %vm584, %v582, %v540
    %v588 = vsel %vm584, %v583, %v542
    %v589 = vsel %vm333, %v549, %v564
    %v590 = vsel %vm333, %v548, %v566
    %v591 = vsel %vm333, %v552, %v568
    %v592 = vsel %vm333, %v551, %v570
    %v593 = vld [vmem:[%s4] sm:$0xff]
    %v594 = vld [vmem:[%s4 + $0x8] sm:$0xff]
    %v595 = vld [vmem:[%s4 + $0x10] sm:$0xff]
    %v596 = vld [vmem:[%s4 + $0x18] sm:$0xff]
    %v597 = vld [vmem:[%s4 + $0x20] sm:$0xff]
    %v598 = vld [vmem:[%s4 + $0x28] sm:$0xff]
    %v599 = vld [vmem:[%s4 + $0x30] sm:$0xff]
    %v600 = vld [vmem:[%s4 + $0x38] sm:$0xff]
    %v601 = vld [vmem:[%s4 + $0x40] sm:$0xff]
    %v602 = vld [vmem:[%s4 + $0x48] sm:$0xff]
    %v603 = vld [vmem:[%s4 + $0x50] sm:$0xff]
    %v604 = vld [vmem:[%s4 + $0x58] sm:$0xff]
    %v605 = vld [vmem:[%s4 + $0x60] sm:$0xff]
    %v606 = vld [vmem:[%s4 + $0x68] sm:$0xff]
    %v607 = vld [vmem:[%s4 + $0x70] sm:$0xff]
    %v608 = vld [vmem:[%s4 + $0x78] sm:$0xff]
    %v609 = vld [vmem:[%s4 + $0x80] sm:$0xff]
    %v610 = vld [vmem:[%s4 + $0x88] sm:$0xff]
    %v611 = vld [vmem:[%s4 + $0x90] sm:$0xff]
    %v612 = vld [vmem:[%s4 + $0x98] sm:$0xff]
    %v613 = vld [vmem:[%s4 + $0xa0] sm:$0xff]
    %v614 = vld [vmem:[%s4 + $0xa8] sm:$0xff]
    %v615 = vld [vmem:[%s4 + $0xb0] sm:$0xff]
    %v616 = vld [vmem:[%s4 + $0xb8] sm:$0xff]
    %v618 = vsel %vm579, %v589, 0
    %v621 = vsel %vm579, %v590, 0
    %623 = vmatprep.subr.mxu0 0.0
    %624 = vmatpush1.msra.mxu0 %v593
    %625 = vmatprep.subr.mxu0 0.0
    %626 = vmatpush1.msra.mxu0 %v594
    %627 = vmatprep.subr.mxu0 0.0
    %628 = vmatpush1.msra.mxu0 %v595
    %629 = vmatprep.subr.mxu0 0.0
    %630 = vmatpush1.msra.mxu0 %v596
    %631 = vmatprep.subr.mxu0 0.0
    %632 = vmatpush1.msra.mxu0 %v597
    %633 = vmatprep.subr.mxu0 0.0
    %634 = vmatpush1.msra.mxu0 %v598
    %635 = vmatprep.subr.mxu0 0.0
    %636 = vmatpush1.msra.mxu0 %v599
    %637 = vmatprep.subr.mxu0 0.0
    %638 = vmatpush1.msra.mxu0 %v600
    %639 = vmatprep.subr.mxu0 0.0
    %640 = vmatpush1.msra.mxu0 %v601
    %641 = vmatprep.subr.mxu0 0.0
    %642 = vmatpush1.msra.mxu0 %v602
    %643 = vmatprep.subr.mxu0 0.0
    %644 = vmatpush1.msra.mxu0 %v603
    %645 = vmatprep.subr.mxu0 0.0
    %646 = vmatpush1.msra.mxu0 %v604
    %647 = vmatprep.subr.mxu0 0.0
    %648 = vmatpush1.msra.mxu0 %v605
    %649 = vmatprep.subr.mxu0 0.0
    %650 = vmatpush1.msra.mxu0 %v606
    %651 = vmatprep.subr.mxu0 0.0
    %652 = vmatpush1.msra.mxu0 %v607
    %653 = vmatprep.subr.mxu0 0.0
    %654 = vmatpush1.msra.mxu0 %v608
    %655 = vmatprep.subr.mxu0 0.0
    %656 = vmatpush1.msra.mxu0 %v609
    %657 = vmatprep.subr.mxu0 0.0
    %658 = vmatpush1.msra.mxu0 %v610
    %659 = vmatprep.subr.mxu0 0.0
    %660 = vmatpush1.msra.mxu0 %v611
    %661 = vmatprep.subr.mxu0 0.0
    %662 = vmatpush1.msra.mxu0 %v612
    %663 = vmatprep.subr.mxu0 0.0
    %664 = vmatpush1.msra.mxu0 %v613
    %665 = vmatprep.subr.mxu0 0.0
    %666 = vmatpush1.msra.mxu0 %v614
    %667 = vmatprep.subr.mxu0 0.0
    %668 = vmatpush1.msra.mxu0 %v615
    %669 = vmatprep.subr.mxu0 0.0
    %670 = vmatpush1.msra.mxu0 %v616
    %671 = vmatprep.subr.mxu0 0.0
    %672 = vmatpush1.msra.mxu0 0.0
    %673 = vmatprep.subr.mxu0 0.0
    %674 = vmatpush1.msra.mxu0 0.0
    %675 = vmatprep.subr.mxu0 0.0
    %676 = vmatpush1.msra.mxu0 0.0
    %677 = vmatprep.subr.mxu0 0.0
    %678 = vmatpush1.msra.mxu0 0.0
    %679 = vmatprep.subr.mxu0 0.0
    %680 = vmatpush1.msra.mxu0 0.0
    %681 = vmatprep.subr.mxu0 0.0
    %682 = vmatpush1.msra.mxu0 0.0
    %683 = vmatprep.subr.mxu0 0.0
    %684 = vmatpush1.msra.mxu0 0.0
    %685 = vmatprep.subr.mxu0 0.0
    %686 = vmatpush1.msra.mxu0 0.0
    %687 = vmatprep.mubr.f32.mxu0 %v618
    %688 = vmatmul.mubr.f32.gmra.mrb[0].mxu0 %v585
    %v689 = vpop.f32.mrb[0].mxu0
    %v690 = vadd.f32 0.0, %v689
    %v691 = vpop.f32.mrb[0].mxu0
    %692 = vmatprep.mubr.f32.mxu0 %v621
    %693 = vmatmul.mubr.f32.gmra.mrb[0].mxu0 %v586
    %v694 = vpop.f32.mrb[0].mxu0
    %v695 = vadd.f32 0.0, %v694
    %v696 = vpop.f32.mrb[0].mxu0
    %697 = vdwg.mxu0
    %v699 = vsel %vm579, %v591, 0
    %v702 = vsel %vm579, %v592, 0
    %704 = vmatprep.subr.mxu0 0.0
    %705 = vmatpush1.msra.mxu0 %v593
    %706 = vmatprep.subr.mxu0 0.0
    %707 = vmatpush1.msra.mxu0 %v594
    %708 = vmatprep.subr.mxu0 0.0
    %709 = vmatpush1.msra.mxu0 %v595
    %710 = vmatprep.subr.mxu0 0.0
    %711 = vmatpush1.msra.mxu0 %v596
    %712 = vmatprep.subr.mxu0 0.0
    %713 = vmatpush1.msra.mxu0 %v597
    %714 = vmatprep.subr.mxu0 0.0
    %715 = vmatpush1.msra.mxu0 %v598
    %716 = vmatprep.subr.mxu0 0.0
    %717 = vmatpush1.msra.mxu0 %v599
    %718 = vmatprep.subr.mxu0 0.0
    %719 = vmatpush1.msra.mxu0 %v600
    %720 = vmatprep.subr.mxu0 0.0
    %721 = vmatpush1.msra.mxu0 %v601
    %722 = vmatprep.subr.mxu0 0.0
    %723 = vmatpush1.msra.mxu0 %v602
    %724 = vmatprep.subr.mxu0 0.0
    %725 = vmatpush1.msra.mxu0 %v603
    %726 = vmatprep.subr.mxu0 0.0
    %727 = vmatpush1.msra.mxu0 %v604
    %728 = vmatprep.subr.mxu0 0.0
    %729 = vmatpush1.msra.mxu0 %v605
    %730 = vmatprep.subr.mxu0 0.0
    %731 = vmatpush1.msra.mxu0 %v606
    %732 = vmatprep.subr.mxu0 0.0
    %733 = vmatpush1.msra.mxu0 %v607
    %734 = vmatprep.subr.mxu0 0.0
    %735 = vmatpush1.msra.mxu0 %v608
    %736 = vmatprep.subr.mxu0 0.0
    %737 = vmatpush1.msra.mxu0 %v609
    %738 = vmatprep.subr.mxu0 0.0
    %739 = vmatpush1.msra.mxu0 %v610
    %740 = vmatprep.subr.mxu0 0.0
    %741 = vmatpush1.msra.mxu0 %v611
    %742 = vmatprep.subr.mxu0 0.0
    %743 = vmatpush1.msra.mxu0 %v612
    %744 = vmatprep.subr.mxu0 0.0
    %745 = vmatpush1.msra.mxu0 %v613
    %746 = vmatprep.subr.mxu0 0.0
    %747 = vmatpush1.msra.mxu0 %v614
    %748 = vmatprep.subr.mxu0 0.0
    %749 = vmatpush1.msra.mxu0 %v615
    %750 = vmatprep.subr.mxu0 0.0
    %751 = vmatpush1.msra.mxu0 %v616
    %752 = vmatprep.subr.mxu0 0.0
    %753 = vmatpush1.msra.mxu0 0.0
    %754 = vmatprep.subr.mxu0 0.0
    %755 = vmatpush1.msra.mxu0 0.0
    %756 = vmatprep.subr.mxu0 0.0
    %757 = vmatpush1.msra.mxu0 0.0
    %758 = vmatprep.subr.mxu0 0.0
    %759 = vmatpush1.msra.mxu0 0.0
    %760 = vmatprep.subr.mxu0 0.0
    %761 = vmatpush1.msra.mxu0 0.0
    %762 = vmatprep.subr.mxu0 0.0
    %763 = vmatpush1.msra.mxu0 0.0
    %764 = vmatprep.subr.mxu0 0.0
    %765 = vmatpush1.msra.mxu0 0.0
    %766 = vmatprep.subr.mxu0 0.0
    %767 = vmatpush1.msra.mxu0 0.0
    %768 = vmatprep.mubr.f32.mxu0 %v699
    %769 = vmatmul.mubr.f32.gmra.mrb[0].mxu0 %v587
    %v770 = vpop.f32.mrb[0].mxu0
    %v771 = vadd.f32 0.0, %v770
    %v772 = vpop.f32.mrb[0].mxu0
    %773 = vmatprep.mubr.f32.mxu0 %v702
    %774 = vmatmul.mubr.f32.gmra.mrb[0].mxu0 %v588
    %v775 = vpop.f32.mrb[0].mxu0
    %v776 = vadd.f32 0.0, %v775
    %v777 = vpop.f32.mrb[0].mxu0
    %778 = vdwg.mxu0
    %v779 = vsel %vm579, %v690, 0.0
    %vm780 = vcmask 516096
    %v781 = vsel %vm780, %v695, 0.0
    %v782 = vadd.f32 %v779, %v781
    %v783 = vrot.slane %v782, 4
    %v784 = vadd.f32 %v782, %v783
    %v785 = vrot.slane %v784, 2
    %v786 = vadd.f32 %v784, %v785
    %v787 = vrot.slane %v786, 1
    %v788 = vadd.f32 %v786, %v787
    %v789 = vadd.f32 %v788, 0.0
    %v790 = vsel %vm579, %v771, 0.0
    %v791 = vsel %vm780, %v776, 0.0
    %v792 = vadd.f32 %v790, %v791
    %v793 = vrot.slane %v792, 4
    %v794 = vadd.f32 %v792, %v793
    %v795 = vrot.slane %v794, 2
    %v796 = vadd.f32 %v794, %v795
    %v797 = vrot.slane %v796, 1
    %v798 = vadd.f32 %v796, %v797
    %v799 = vadd.f32 %v789, %v798
    %v800 = vrcp.pop 18.0
    %v801 = vmul.f32 %v799, %v800
    %v802 = vsub.f32 %v690, %v801
    %v803 = vsub.f32 %v695, %v801
    %v804 = vmul.f32 %v802, %v802
    %v805 = vmul.f32 %v803, %v803
    %v806 = vsel %vm579, %v804, 0.0
    %v807 = vsel %vm780, %v805, 0.0
    %v808 = vadd.f32 %v806, %v807
    %v809 = vrot.slane %v808, 4
    %v810 = vadd.f32 %v808, %v809
    %v811 = vrot.slane %v810, 2
    %v812 = vadd.f32 %v810, %v811
    %v813 = vrot.slane %v812, 1
    %v814 = vadd.f32 %v812, %v813
    %v815 = vadd.f32 %v814, 0.0
    %v816 = vsub.f32 %v771, %v801
    %v817 = vsub.f32 %v776, %v801
    %v818 = vmul.f32 %v816, %v816
    %v819 = vmul.f32 %v817, %v817
    %v820 = vsel %vm579, %v818, 0.0
    %v821 = vsel %vm780, %v819, 0.0
    %v822 = vadd.f32 %v820, %v821
    %v823 = vrot.slane %v822, 4
    %v824 = vadd.f32 %v822, %v823
    %v825 = vrot.slane %v824, 2
    %v826 = vadd.f32 %v824, %v825
    %v827 = vrot.slane %v826, 1
    %v828 = vadd.f32 %v826, %v827
    %v829 = vadd.f32 %v815, %v828
    %v830 = vld [vmem:[%s5] sm:$0x1]
    %v831 = vmul.f32 %v829, %v800
    %v832 = vadd.f32 %v831, 1e-05
    %v833 = vrsqrt.pop %v832
    %v834 = vmul.f32 %v830, %v833
    %v835 = vld [vmem:[%s6] sm:$0x1]
    %v836 = vmul.f32 %v801, %v834
    %v837 = vsub.f32 %v835, %v836
    %v839 = vlaneseq
    %v840 = vshrl.u32 %v839, 7
    %v841 = vsub.s32 0, %v840
    %v842 = vrot.slane %v834, %v841
    %v844 = vmul.f32 %v690, %v842
    %v846 = vlaneseq
    %v847 = vshrl.u32 %v846, 7
    %v848 = vsub.s32 0, %v847
    %v849 = vrot.slane %v837, %v848
    %v851 = vadd.f32 %v844, %v849
    %v852 = vmax.f32 %v851, 0.0
    %v854 = vrot.slane %v852, 1
    %v856 = vmax.f32 %v852, %v854
    %v857 = vmul.f32 %v771, %v842
    %v858 = vadd.f32 %v857, %v849
    %v859 = vmax.f32 %v858, 0.0
    %v861 = vrot.slane %v859, 1
    %v863 = vmax.f32 %v859, %v861
    %v865 = vrot.slane %v856, 2
    %866 = vrot.lane.b32.xlu0 %v865, 16
    %v867 = vpop.permute.xlu0 %866
    %v869 = vrot.slane %v856, 4
    %870 = vrot.lane.b32.xlu0 %v869, 32
    %v871 = vpop.permute.xlu0 %870
    %v873 = vrot.slane %v856, 6
    %874 = vrot.lane.b32.xlu0 %v873, 48
    %v875 = vpop.permute.xlu0 %874
    %vm877 = vcmask 130048
    %v878 = vsel %vm877, %v856, %v867
    %v879 = vsel %vm333, %v878, %v871
    %vm880 = vcmask 392192
    %v881 = vsel %vm880, %v879, %v875
    %v883 = vrot.slane %v863, 2
    %884 = vrot.lane.b32.xlu0 %v883, 16
    %v885 = vpop.permute.xlu0 %884
    %v887 = vrot.slane %v863, 4
    %888 = vrot.lane.b32.xlu0 %v887, 32
    %v889 = vpop.permute.xlu0 %888
    %v891 = vrot.slane %v863, 6
    %892 = vrot.lane.b32.xlu0 %v891, 48
    %v893 = vpop.permute.xlu0 %892
    %v895 = vsel %vm877, %v863, %v885
    %v896 = vsel %vm333, %v895, %v889
    %v897 = vsel %vm880, %v896, %v893
    %898 = vrot.lane.b32.xlu0 %v856, 112
    %v899 = vpop.permute.xlu0 %898
    %902 = vrot.lane.b32.xlu0 %v869, 16
    %v903 = vpop.permute.xlu0 %902
    %905 = vrot.lane.b32.xlu0 %v873, 32
    %v906 = vpop.permute.xlu0 %905
    %v908 = vsel %vm877, %v899, %v865
    %v909 = vsel %vm333, %v908, %v903
    %v910 = vsel %vm880, %v909, %v906
    %911 = vrot.lane.b32.xlu0 %v863, 112
    %v912 = vpop.permute.xlu0 %911
    %915 = vrot.lane.b32.xlu0 %v887, 16
    %v916 = vpop.permute.xlu0 %915
    %918 = vrot.lane.b32.xlu0 %v891, 32
    %v919 = vpop.permute.xlu0 %918
    %v921 = vsel %vm877, %v912, %v883
    %v922 = vsel %vm333, %v921, %v916
    %v923 = vsel %vm880, %v922, %v919
    %924 = vrot.lane.b32.xlu0 %v856, 96
    %v925 = vpop.permute.xlu0 %924
    %927 = vrot.lane.b32.xlu0 %v865, 112
    %v928 = vpop.permute.xlu0 %927
    %931 = vrot.lane.b32.xlu0 %v873, 16
    %v932 = vpop.permute.xlu0 %931
    %v934 = vsel %vm877, %v925, %v928
    %v935 = vsel %vm333, %v934, %v869
    %v936 = vsel %vm880, %v935, %v932
    %937 = vrot.lane.b32.xlu0 %v863, 96
    %v938 = vpop.permute.xlu0 %937
    %940 = vrot.lane.b32.xlu0 %v883, 112
    %v941 = vpop.permute.xlu0 %940
    %944 = vrot.lane.b32.xlu0 %v891, 16
    %v945 = vpop.permute.xlu0 %944
    %v947 = vsel %vm877, %v938, %v941
    %v948 = vsel %vm333, %v947, %v887
    %v949 = vsel %vm880, %v948, %v945
    %950 = vrot.lane.b32.xlu0 %v856, 80
    %v951 = vpop.permute.xlu0 %950
    %953 = vrot.lane.b32.xlu0 %v865, 96
    %v954 = vpop.permute.xlu0 %953
    %956 = vrot.lane.b32.xlu0 %v869, 112
    %v957 = vpop.permute.xlu0 %956
    %v960 = vsel %vm877, %v951, %v954
    %v961 = vsel %vm333, %v960, %v957
    %v962 = vsel %vm880, %v961, %v873
    %963 = vrot.lane.b32.xlu0 %v863, 80
    %v964 = vpop.permute.xlu0 %963
    %966 = vrot.lane.b32.xlu0 %v883, 96
    %v967 = vpop.permute.xlu0 %966
    %969 = vrot.lane.b32.xlu0 %v887, 112
    %v970 = vpop.permute.xlu0 %969
    %v973 = vsel %vm877, %v964, %v967
    %v974 = vsel %vm333, %v973, %v970
    %v975 = vsel %vm880, %v974, %v891
    %v977 = vrot.slane %v897, 7
    %v980 = vrot.slane %v910, 6
    %v983 = vrot.slane %v923, 5
    %v986 = vrot.slane %v936, 4
    %v989 = vrot.slane %v949, 3
    %v992 = vrot.slane %v962, 2
    %v995 = vrot.slane %v975, 1
    %v997 = vsel %vm481, %v881, %v977
    %v998 = vsel %vm484, %v997, %v980
    %v999 = vsel %vm74, %v998, %v983
    %v1000 = vsel %vm271, %v999, %v986
    %v1001 = vsel %vm231, %v1000, %v989
    %v1002 = vsel %vm191, %v1001, %v992
    %v1003 = vsel %vm151, %v1002, %v995
    %v1004 = vld [vmem:[%s7] sm:$0xff]
    %v1005 = vld [vmem:[%s7 + $0x8] sm:$0xff]
    %v1006 = vld [vmem:[%s7 + $0x10] sm:$0xff]
    %v1007 = vld [vmem:[%s7 + $0x18] sm:$0xff]
    %v1008 = vld [vmem:[%s7 + $0x20] sm:$0xff]
    %v1009 = vld [vmem:[%s7 + $0x28] sm:$0xff]
    %v1010 = vld [vmem:[%s7 + $0x30] sm:$0xff]
    %v1011 = vld [vmem:[%s7 + $0x38] sm:$0xff]
    %v1012 = vld [vmem:[%s9] sm:$0x1]
    %v1014 = vlaneseq
    %v1015 = vshrl.u32 %v1014, 7
    %v1016 = vsub.s32 0, %v1015
    %v1017 = vrot.slane %v1012, %v1016
    %v1020 = vsel %vm579, %v1003, 0
    %1022 = vmatprep.subr.mxu0 0.0
    %1023 = vmatpush1.msra.mxu0 %v1004
    %1024 = vmatprep.subr.mxu0 0.0
    %1025 = vmatpush1.msra.mxu0 %v1005
    %1026 = vmatprep.subr.mxu0 0.0
    %1027 = vmatpush1.msra.mxu0 %v1006
    %1028 = vmatprep.subr.mxu0 0.0
    %1029 = vmatpush1.msra.mxu0 %v1007
    %1030 = vmatprep.subr.mxu0 0.0
    %1031 = vmatpush1.msra.mxu0 %v1008
    %1032 = vmatprep.subr.mxu0 0.0
    %1033 = vmatpush1.msra.mxu0 %v1009
    %1034 = vmatprep.subr.mxu0 0.0
    %1035 = vmatpush1.msra.mxu0 %v1010
    %1036 = vmatprep.subr.mxu0 0.0
    %1037 = vmatpush1.msra.mxu0 %v1011
    %1038 = vmatprep.subr.mxu0 0.0
    %1039 = vmatpush1.msra.mxu0 0.0
    %1040 = vmatprep.subr.mxu0 0.0
    %1041 = vmatpush1.msra.mxu0 0.0
    %1042 = vmatprep.subr.mxu0 0.0
    %1043 = vmatpush1.msra.mxu0 0.0
    %1044 = vmatprep.subr.mxu0 0.0
    %1045 = vmatpush1.msra.mxu0 0.0
    %1046 = vmatprep.subr.mxu0 0.0
    %1047 = vmatpush1.msra.mxu0 0.0
    %1048 = vmatprep.subr.mxu0 0.0
    %1049 = vmatpush1.msra.mxu0 0.0
    %1050 = vmatprep.subr.mxu0 0.0
    %1051 = vmatpush1.msra.mxu0 0.0
    %1052 = vmatprep.subr.mxu0 0.0
    %1053 = vmatpush1.msra.mxu0 0.0
    %1054 = vmatprep.subr.mxu0 0.0
    %1055 = vmatpush1.msra.mxu0 0.0
    %1056 = vmatprep.subr.mxu0 0.0
    %1057 = vmatpush1.msra.mxu0 0.0
    %1058 = vmatprep.subr.mxu0 0.0
    %1059 = vmatpush1.msra.mxu0 0.0
    %1060 = vmatprep.subr.mxu0 0.0
    %1061 = vmatpush1.msra.mxu0 0.0
    %1062 = vmatprep.subr.mxu0 0.0
    %1063 = vmatpush1.msra.mxu0 0.0
    %1064 = vmatprep.subr.mxu0 0.0
    %1065 = vmatpush1.msra.mxu0 0.0
    %1066 = vmatprep.subr.mxu0 0.0
    %1067 = vmatpush1.msra.mxu0 0.0
    %1068 = vmatprep.subr.mxu0 0.0
    %1069 = vmatpush1.msra.mxu0 0.0
    %1070 = vmatprep.subr.mxu0 0.0
    %1071 = vmatpush1.msra.mxu0 0.0
    %1072 = vmatprep.subr.mxu0 0.0
    %1073 = vmatpush1.msra.mxu0 0.0
    %1074 = vmatprep.subr.mxu0 0.0
    %1075 = vmatpush1.msra.mxu0 0.0
    %1076 = vmatprep.subr.mxu0 0.0
    %1077 = vmatpush1.msra.mxu0 0.0
    %1078 = vmatprep.subr.mxu0 0.0
    %1079 = vmatpush1.msra.mxu0 0.0
    %1080 = vmatprep.subr.mxu0 0.0
    %1081 = vmatpush1.msra.mxu0 0.0
    %1082 = vmatprep.subr.mxu0 0.0
    %1083 = vmatpush1.msra.mxu0 0.0
    %1084 = vmatprep.subr.mxu0 0.0
    %1085 = vmatpush1.msra.mxu0 0.0
    %1086 = vmatprep.mubr.f32.mxu0 0.0
    %1087 = vmatmul.mubr.f32.gmra.mrb[0].mxu0 %v1020
    %v1088 = vpop.f32.mrb[0].mxu0
    %v1089 = vadd.f32 %v1017, %v1088
    %v1090 = vpop.f32.mrb[0].mxu0
    %1091 = vdwg.mxu0
    %v1092 = vld [vmem:[%s8] sm:$0xff]
    %v1093 = vld [vmem:[%s8 + $0x8] sm:$0xff]
    %v1094 = vld [vmem:[%s8 + $0x10] sm:$0xff]
    %v1095 = vld [vmem:[%s8 + $0x18] sm:$0xff]
    %v1097 = vsel %vm333, 0.0, 0
    %1099 = vmatprep.subr.mxu0 0.0
    %1100 = vmatpush1.msra.mxu0 %v1092
    %1101 = vmatprep.subr.mxu0 0.0
    %1102 = vmatpush1.msra.mxu0 %v1093
    %1103 = vmatprep.subr.mxu0 0.0
    %1104 = vmatpush1.msra.mxu0 %v1094
    %1105 = vmatprep.subr.mxu0 0.0
    %1106 = vmatpush1.msra.mxu0 %v1095
    %1107 = vmatprep.subr.mxu0 0.0
    %1108 = vmatpush1.msra.mxu0 0.0
    %1109 = vmatprep.subr.mxu0 0.0
    %1110 = vmatpush1.msra.mxu0 0.0
    %1111 = vmatprep.subr.mxu0 0.0
    %1112 = vmatpush1.msra.mxu0 0.0
    %1113 = vmatprep.subr.mxu0 0.0
    %1114 = vmatpush1.msra.mxu0 0.0
    %1115 = vmatprep.subr.mxu0 0.0
    %1116 = vmatpush1.msra.mxu0 0.0
    %1117 = vmatprep.subr.mxu0 0.0
    %1118 = vmatpush1.msra.mxu0 0.0
    %1119 = vmatprep.subr.mxu0 0.0
    %1120 = vmatpush1.msra.mxu0 0.0
    %1121 = vmatprep.subr.mxu0 0.0
    %1122 = vmatpush1.msra.mxu0 0.0
    %1123 = vmatprep.subr.mxu0 0.0
    %1124 = vmatpush1.msra.mxu0 0.0
    %1125 = vmatprep.subr.mxu0 0.0
    %1126 = vmatpush1.msra.mxu0 0.0
    %1127 = vmatprep.subr.mxu0 0.0
    %1128 = vmatpush1.msra.mxu0 0.0
    %1129 = vmatprep.subr.mxu0 0.0
    %1130 = vmatpush1.msra.mxu0 0.0
    %1131 = vmatprep.subr.mxu0 0.0
    %1132 = vmatpush1.msra.mxu0 0.0
    %1133 = vmatprep.subr.mxu0 0.0
    %1134 = vmatpush1.msra.mxu0 0.0
    %1135 = vmatprep.subr.mxu0 0.0
    %1136 = vmatpush1.msra.mxu0 0.0
    %1137 = vmatprep.subr.mxu0 0.0
    %1138 = vmatpush1.msra.mxu0 0.0
    %1139 = vmatprep.subr.mxu0 0.0
    %1140 = vmatpush1.msra.mxu0 0.0
    %1141 = vmatprep.subr.mxu0 0.0
    %1142 = vmatpush1.msra.mxu0 0.0
    %1143 = vmatprep.subr.mxu0 0.0
    %1144 = vmatpush1.msra.mxu0 0.0
    %1145 = vmatprep.subr.mxu0 0.0
    %1146 = vmatpush1.msra.mxu0 0.0
    %1147 = vmatprep.subr.mxu0 0.0
    %1148 = vmatpush1.msra.mxu0 0.0
    %1149 = vmatprep.subr.mxu0 0.0
    %1150 = vmatpush1.msra.mxu0 0.0
    %1151 = vmatprep.subr.mxu0 0.0
    %1152 = vmatpush1.msra.mxu0 0.0
    %1153 = vmatprep.subr.mxu0 0.0
    %1154 = vmatpush1.msra.mxu0 0.0
    %1155 = vmatprep.subr.mxu0 0.0
    %1156 = vmatpush1.msra.mxu0 0.0
    %1157 = vmatprep.subr.mxu0 0.0
    %1158 = vmatpush1.msra.mxu0 0.0
    %1159 = vmatprep.subr.mxu0 0.0
    %1160 = vmatpush1.msra.mxu0 0.0
    %1161 = vmatprep.subr.mxu0 0.0
    %1162 = vmatpush1.msra.mxu0 0.0
    %1163 = vmatprep.mubr.f32.mxu0 0.0
    %1164 = vmatmul.mubr.f32.gmra.mrb[0].mxu0 %v1097
    %v1165 = vpop.f32.mrb[0].mxu0
    %v1166 = vadd.f32 0.0, %v1165
    %v1167 = vpop.f32.mrb[0].mxu0
    %1168 = vdwg.mxu0
    %v1169 = vadd.f32 %v1089, %v1166
    %v1170 = vxor.u32 %v1169, 2147483648
    %v1171 = vmul.f32 %v1170, 1.442695
    %v1172 = vpow.pop %v1171
    %v1173 = vadd.f32 %v1172, 1.0
    %v1174 = vrcp.pop %v1173
    %v1175 = vmul.f32 1.0, %v1174
    %v1176 = vtanh.pop %v1169
    %v1177 = vmul.f32 %v1175, 0.0
    %1179 = vrot.lane.b32.xlu0 %v1176, 64
    %v1180 = vpop.permute.xlu0 %1179
    %v1182 = vmul.f32 %v1175, %v1180
    %1184 = vrot.lane.b32.xlu0 %v1182, 32
    %v1185 = vpop.permute.xlu0 %1184
    %v1187 = vadd.f32 %v1177, %v1185
    %v1188 = vtanh.pop %v1187
    %1190 = vrot.lane.b32.xlu0 %v1188, 64
    %v1191 = vpop.permute.xlu0 %1190
    %v1193 = vmul.f32 %v1175, %v1191
    %1195 = vrot.lane.b32.xlu0 %v1193, 32
    %v1196 = vpop.permute.xlu0 %1195
    %v1197 = vsel %vm333, %v1196, 0
    %1199 = vmatprep.subr.mxu0 0.0
    %1200 = vmatpush1.msra.mxu0 %v1092
    %1201 = vmatprep.subr.mxu0 0.0
    %1202 = vmatpush1.msra.mxu0 %v1093
    %1203 = vmatprep.subr.mxu0 0.0
    %1204 = vmatpush1.msra.mxu0 %v1094
    %1205 = vmatprep.subr.mxu0 0.0
    %1206 = vmatpush1.msra.mxu0 %v1095
    %1207 = vmatprep.subr.mxu0 0.0
    %1208 = vmatpush1.msra.mxu0 0.0
    %1209 = vmatprep.subr.mxu0 0.0
    %1210 = vmatpush1.msra.mxu0 0.0
    %1211 = vmatprep.subr.mxu0 0.0
    %1212 = vmatpush1.msra.mxu0 0.0
    %1213 = vmatprep.subr.mxu0 0.0
    %1214 = vmatpush1.msra.mxu0 0.0
    %1215 = vmatprep.subr.mxu0 0.0
    %1216 = vmatpush1.msra.mxu0 0.0
    %1217 = vmatprep.subr.mxu0 0.0
    %1218 = vmatpush1.msra.mxu0 0.0
    %1219 = vmatprep.subr.mxu0 0.0
    %1220 = vmatpush1.msra.mxu0 0.0
    %1221 = vmatprep.subr.mxu0 0.0
    %1222 = vmatpush1.msra.mxu0 0.0
    %1223 = vmatprep.subr.mxu0 0.0
    %1224 = vmatpush1.msra.mxu0 0.0
    %1225 = vmatprep.subr.mxu0 0.0
    %1226 = vmatpush1.msra.mxu0 0.0
    %1227 = vmatprep.subr.mxu0 0.0
    %1228 = vmatpush1.msra.mxu0 0.0
    %1229 = vmatprep.subr.mxu0 0.0
    %1230 = vmatpush1.msra.mxu0 0.0
    %1231 = vmatprep.subr.mxu0 0.0
    %1232 = vmatpush1.msra.mxu0 0.0
    %1233 = vmatprep.subr.mxu0 0.0
    %1234 = vmatpush1.msra.mxu0 0.0
    %1235 = vmatprep.subr.mxu0 0.0
    %1236 = vmatpush1.msra.mxu0 0.0
    %1237 = vmatprep.subr.mxu0 0.0
    %1238 = vmatpush1.msra.mxu0 0.0
    %1239 = vmatprep.subr.mxu0 0.0
    %1240 = vmatpush1.msra.mxu0 0.0
    %1241 = vmatprep.subr.mxu0 0.0
    %1242 = vmatpush1.msra.mxu0 0.0
    %1243 = vmatprep.subr.mxu0 0.0
    %1244 = vmatpush1.msra.mxu0 0.0
    %1245 = vmatprep.subr.mxu0 0.0
    %1246 = vmatpush1.msra.mxu0 0.0
    %1247 = vmatprep.subr.mxu0 0.0
    %1248 = vmatpush1.msra.mxu0 0.0
    %1249 = vmatprep.subr.mxu0 0.0
    %1250 = vmatpush1.msra.mxu0 0.0
    %1251 = vmatprep.subr.mxu0 0.0
    %1252 = vmatpush1.msra.mxu0 0.0
    %1253 = vmatprep.subr.mxu0 0.0
    %1254 = vmatpush1.msra.mxu0 0.0
    %1255 = vmatprep.subr.mxu0 0.0
    %1256 = vmatpush1.msra.mxu0 0.0
    %1257 = vmatprep.subr.mxu0 0.0
    %1258 = vmatpush1.msra.mxu0 0.0
    %1259 = vmatprep.subr.mxu0 0.0
    %1260 = vmatpush1.msra.mxu0 0.0
    %1261 = vmatprep.subr.mxu0 0.0
    %1262 = vmatpush1.msra.mxu0 0.0
    %1263 = vmatprep.mubr.f32.mxu0 0.0
    %1264 = vmatmul.mubr.f32.gmra.mrb[0].mxu0 %v1197
    %v1265 = vpop.f32.mrb[0].mxu0
    %v1266 = vadd.f32 0.0, %v1265
    %v1267 = vpop.f32.mrb[0].mxu0
    %1268 = vdwg.mxu0
    %v1270 = vrot.slane %v1266, 6
    %v1272 = vadd.f32 %v1089, %v1270
    %v1273 = vxor.u32 %v1272, 2147483648
    %v1274 = vmul.f32 %v1273, 1.442695
    %v1275 = vpow.pop %v1274
    %v1276 = vadd.f32 %v1275, 1.0
    %v1277 = vrcp.pop %v1276
    %v1278 = vmul.f32 1.0, %v1277
    %v1279 = vtanh.pop %v1272
    %v1281 = vrot.slane %v1187, 6
    %v1283 = vmul.f32 %v1278, %v1281
    %1285 = vrot.lane.b32.xlu0 %v1279, 64
    %v1286 = vpop.permute.xlu0 %1285
    %v1288 = vmul.f32 %v1278, %v1286
    %1290 = vrot.lane.b32.xlu0 %v1288, 32
    %v1291 = vpop.permute.xlu0 %1290
    %v1293 = vadd.f32 %v1283, %v1291
    %v1294 = vtanh.pop %v1293
    %1296 = vrot.lane.b32.xlu0 %v1294, 64
    %v1297 = vpop.permute.xlu0 %1296
    %v1299 = vmul.f32 %v1278, %v1297
    %v1301 = vrot.slane %v1299, 2
    %1302 = vrot.lane.b32.xlu0 %v1301, 32
    %v1303 = vpop.permute.xlu0 %1302
    %v1304 = vsel %vm333, %v1303, 0
    %1306 = vmatprep.subr.mxu0 0.0
    %1307 = vmatpush1.msra.mxu0 %v1092
    %1308 = vmatprep.subr.mxu0 0.0
    %1309 = vmatpush1.msra.mxu0 %v1093
    %1310 = vmatprep.subr.mxu0 0.0
    %1311 = vmatpush1.msra.mxu0 %v1094
    %1312 = vmatprep.subr.mxu0 0.0
    %1313 = vmatpush1.msra.mxu0 %v1095
    %1314 = vmatprep.subr.mxu0 0.0
    %1315 = vmatpush1.msra.mxu0 0.0
    %1316 = vmatprep.subr.mxu0 0.0
    %1317 = vmatpush1.msra.mxu0 0.0
    %1318 = vmatprep.subr.mxu0 0.0
    %1319 = vmatpush1.msra.mxu0 0.0
    %1320 = vmatprep.subr.mxu0 0.0
    %1321 = vmatpush1.msra.mxu0 0.0
    %1322 = vmatprep.subr.mxu0 0.0
    %1323 = vmatpush1.msra.mxu0 0.0
    %1324 = vmatprep.subr.mxu0 0.0
    %1325 = vmatpush1.msra.mxu0 0.0
    %1326 = vmatprep.subr.mxu0 0.0
    %1327 = vmatpush1.msra.mxu0 0.0
    %1328 = vmatprep.subr.mxu0 0.0
    %1329 = vmatpush1.msra.mxu0 0.0
    %1330 = vmatprep.subr.mxu0 0.0
    %1331 = vmatpush1.msra.mxu0 0.0
    %1332 = vmatprep.subr.mxu0 0.0
    %1333 = vmatpush1.msra.mxu0 0.0
    %1334 = vmatprep.subr.mxu0 0.0
    %1335 = vmatpush1.msra.mxu0 0.0
    %1336 = vmatprep.subr.mxu0 0.0
    %1337 = vmatpush1.msra.mxu0 0.0
    %1338 = vmatprep.subr.mxu0 0.0
    %1339 = vmatpush1.msra.mxu0 0.0
    %1340 = vmatprep.subr.mxu0 0.0
    %1341 = vmatpush1.msra.mxu0 0.0
    %1342 = vmatprep.subr.mxu0 0.0
    %1343 = vmatpush1.msra.mxu0 0.0
    %1344 = vmatprep.subr.mxu0 0.0
    %1345 = vmatpush1.msra.mxu0 0.0
    %1346 = vmatprep.subr.mxu0 0.0
    %1347 = vmatpush1.msra.mxu0 0.0
    %1348 = vmatprep.subr.mxu0 0.0
    %1349 = vmatpush1.msra.mxu0 0.0
    %1350 = vmatprep.subr.mxu0 0.0
    %1351 = vmatpush1.msra.mxu0 0.0
    %1352 = vmatprep.subr.mxu0 0.0
    %1353 = vmatpush1.msra.mxu0 0.0
    %1354 = vmatprep.subr.mxu0 0.0
    %1355 = vmatpush1.msra.mxu0 0.0
    %1356 = vmatprep.subr.mxu0 0.0
    %1357 = vmatpush1.msra.mxu0 0.0
    %1358 = vmatprep.subr.mxu0 0.0
    %1359 = vmatpush1.msra.mxu0 0.0
    %1360 = vmatprep.subr.mxu0 0.0
    %1361 = vmatpush1.msra.mxu0 0.0
    %1362 = vmatprep.subr.mxu0 0.0
    %1363 = vmatpush1.msra.mxu0 0.0
    %1364 = vmatprep.subr.mxu0 0.0
    %1365 = vmatpush1.msra.mxu0 0.0
    %1366 = vmatprep.subr.mxu0 0.0
    %1367 = vmatpush1.msra.mxu0 0.0
    %1368 = vmatprep.subr.mxu0 0.0
    %1369 = vmatpush1.msra.mxu0 0.0
    %1370 = vmatprep.mubr.f32.mxu0 0.0
    %1371 = vmatmul.mubr.f32.gmra.mrb[0].mxu0 %v1304
    %v1372 = vpop.f32.mrb[0].mxu0
    %v1373 = vadd.f32 0.0, %v1372
    %v1374 = vpop.f32.mrb[0].mxu0
    %1375 = vdwg.mxu0
    %v1377 = vrot.slane %v1373, 4
    %v1379 = vadd.f32 %v1089, %v1377
    %v1380 = vxor.u32 %v1379, 2147483648
    %v1381 = vmul.f32 %v1380, 1.442695
    %v1382 = vpow.pop %v1381
    %v1383 = vadd.f32 %v1382, 1.0
    %v1384 = vrcp.pop %v1383
    %v1385 = vmul.f32 1.0, %v1384
    %v1386 = vtanh.pop %v1379
    %v1388 = vrot.slane %v1293, 6
    %v1390 = vmul.f32 %v1385, %v1388
    %1392 = vrot.lane.b32.xlu0 %v1386, 64
    %v1393 = vpop.permute.xlu0 %1392
    %v1395 = vmul.f32 %v1385, %v1393
    %1397 = vrot.lane.b32.xlu0 %v1395, 32
    %v1398 = vpop.permute.xlu0 %1397
    %v1400 = vadd.f32 %v1390, %v1398
    %v1401 = vtanh.pop %v1400
    %1403 = vrot.lane.b32.xlu0 %v1401, 64
    %v1404 = vpop.permute.xlu0 %1403
    %v1406 = vmul.f32 %v1385, %v1404
    %v1408 = vrot.slane %v1406, 4
    %1409 = vrot.lane.b32.xlu0 %v1408, 32
    %v1410 = vpop.permute.xlu0 %1409
    %v1411 = vsel %vm333, %v1410, 0
    %1413 = vmatprep.subr.mxu0 0.0
    %1414 = vmatpush1.msra.mxu0 %v1092
    %1415 = vmatprep.subr.mxu0 0.0
    %1416 = vmatpush1.msra.mxu0 %v1093
    %1417 = vmatprep.subr.mxu0 0.0
    %1418 = vmatpush1.msra.mxu0 %v1094
    %1419 = vmatprep.subr.mxu0 0.0
    %1420 = vmatpush1.msra.mxu0 %v1095
    %1421 = vmatprep.subr.mxu0 0.0
    %1422 = vmatpush1.msra.mxu0 0.0
    %1423 = vmatprep.subr.mxu0 0.0
    %1424 = vmatpush1.msra.mxu0 0.0
    %1425 = vmatprep.subr.mxu0 0.0
    %1426 = vmatpush1.msra.mxu0 0.0
    %1427 = vmatprep.subr.mxu0 0.0
    %1428 = vmatpush1.msra.mxu0 0.0
    %1429 = vmatprep.subr.mxu0 0.0
    %1430 = vmatpush1.msra.mxu0 0.0
    %1431 = vmatprep.subr.mxu0 0.0
    %1432 = vmatpush1.msra.mxu0 0.0
    %1433 = vmatprep.subr.mxu0 0.0
    %1434 = vmatpush1.msra.mxu0 0.0
    %1435 = vmatprep.subr.mxu0 0.0
    %1436 = vmatpush1.msra.mxu0 0.0
    %1437 = vmatprep.subr.mxu0 0.0
    %1438 = vmatpush1.msra.mxu0 0.0
    %1439 = vmatprep.subr.mxu0 0.0
    %1440 = vmatpush1.msra.mxu0 0.0
    %1441 = vmatprep.subr.mxu0 0.0
    %1442 = vmatpush1.msra.mxu0 0.0
    %1443 = vmatprep.subr.mxu0 0.0
    %1444 = vmatpush1.msra.mxu0 0.0
    %1445 = vmatprep.subr.mxu0 0.0
    %1446 = vmatpush1.msra.mxu0 0.0
    %1447 = vmatprep.subr.mxu0 0.0
    %1448 = vmatpush1.msra.mxu0 0.0
    %1449 = vmatprep.subr.mxu0 0.0
    %1450 = vmatpush1.msra.mxu0 0.0
    %1451 = vmatprep.subr.mxu0 0.0
    %1452 = vmatpush1.msra.mxu0 0.0
    %1453 = vmatprep.subr.mxu0 0.0
    %1454 = vmatpush1.msra.mxu0 0.0
    %1455 = vmatprep.subr.mxu0 0.0
    %1456 = vmatpush1.msra.mxu0 0.0
    %1457 = vmatprep.subr.mxu0 0.0
    %1458 = vmatpush1.msra.mxu0 0.0
    %1459 = vmatprep.subr.mxu0 0.0
    %1460 = vmatpush1.msra.mxu0 0.0
    %1461 = vmatprep.subr.mxu0 0.0
    %1462 = vmatpush1.msra.mxu0 0.0
    %1463 = vmatprep.subr.mxu0 0.0
    %1464 = vmatpush1.msra.mxu0 0.0
    %1465 = vmatprep.subr.mxu0 0.0
    %1466 = vmatpush1.msra.mxu0 0.0
    %1467 = vmatprep.subr.mxu0 0.0
    %1468 = vmatpush1.msra.mxu0 0.0
    %1469 = vmatprep.subr.mxu0 0.0
    %1470 = vmatpush1.msra.mxu0 0.0
    %1471 = vmatprep.subr.mxu0 0.0
    %1472 = vmatpush1.msra.mxu0 0.0
    %1473 = vmatprep.subr.mxu0 0.0
    %1474 = vmatpush1.msra.mxu0 0.0
    %1475 = vmatprep.subr.mxu0 0.0
    %1476 = vmatpush1.msra.mxu0 0.0
    %1477 = vmatprep.mubr.f32.mxu0 0.0
    %1478 = vmatmul.mubr.f32.gmra.mrb[0].mxu0 %v1411
    %v1479 = vpop.f32.mrb[0].mxu0
    %v1480 = vadd.f32 0.0, %v1479
    %v1481 = vpop.f32.mrb[0].mxu0
    %1482 = vdwg.mxu0
    %v1484 = vrot.slane %v1480, 2
    %v1486 = vadd.f32 %v1089, %v1484
    %v1487 = vxor.u32 %v1486, 2147483648
    %v1488 = vmul.f32 %v1487, 1.442695
    %v1489 = vpow.pop %v1488
    %v1490 = vadd.f32 %v1489, 1.0
    %v1491 = vrcp.pop %v1490
    %v1492 = vmul.f32 1.0, %v1491
    %v1493 = vtanh.pop %v1486
    %v1495 = vrot.slane %v1400, 6
    %v1497 = vmul.f32 %v1492, %v1495
    %1499 = vrot.lane.b32.xlu0 %v1493, 64
    %v1500 = vpop.permute.xlu0 %1499
    %v1502 = vmul.f32 %v1492, %v1500
    %1504 = vrot.lane.b32.xlu0 %v1502, 32
    %v1505 = vpop.permute.xlu0 %1504
    %v1507 = vadd.f32 %v1497, %v1505
    %v1508 = vtanh.pop %v1507
    %1510 = vrot.lane.b32.xlu0 %v1508, 64
    %v1511 = vpop.permute.xlu0 %1510
    %v1513 = vmul.f32 %v1492, %v1511
    %v1514 = vld [vmem:[%s10] sm:$0xff]
    %v1515 = vld [vmem:[%s10 + $0x8] sm:$0xff]
    %v1516 = vld [vmem:[%s10 + $0x10] sm:$0xff]
    %v1517 = vld [vmem:[%s10 + $0x18] sm:$0xff]
    %v1518 = vld [vmem:[#allocation5] sm:$0x1]
    %v1520 = vlaneseq
    %v1521 = vshrl.u32 %v1520, 7
    %v1522 = vsub.s32 0, %v1521
    %v1523 = vrot.slane %v1518, %v1522
    %v1526 = vrot.slane %v1513, 6
    %1527 = vrot.lane.b32.xlu0 %v1526, 32
    %v1528 = vpop.permute.xlu0 %1527
    %v1529 = vsel %vm333, %v1528, 0
    %1531 = vmatprep.subr.mxu0 0.0
    %1532 = vmatpush1.msra.mxu0 %v1514
    %1533 = vmatprep.subr.mxu0 0.0
    %1534 = vmatpush1.msra.mxu0 %v1515
    %1535 = vmatprep.subr.mxu0 0.0
    %1536 = vmatpush1.msra.mxu0 %v1516
    %1537 = vmatprep.subr.mxu0 0.0
    %1538 = vmatpush1.msra.mxu0 %v1517
    %1539 = vmatprep.subr.mxu0 0.0
    %1540 = vmatpush1.msra.mxu0 0.0
    %1541 = vmatprep.subr.mxu0 0.0
    %1542 = vmatpush1.msra.mxu0 0.0
    %1543 = vmatprep.subr.mxu0 0.0
    %1544 = vmatpush1.msra.mxu0 0.0
    %1545 = vmatprep.subr.mxu0 0.0
    %1546 = vmatpush1.msra.mxu0 0.0
    %1547 = vmatprep.subr.mxu0 0.0
    %1548 = vmatpush1.msra.mxu0 0.0
    %1549 = vmatprep.subr.mxu0 0.0
    %1550 = vmatpush1.msra.mxu0 0.0
    %1551 = vmatprep.subr.mxu0 0.0
    %1552 = vmatpush1.msra.mxu0 0.0
    %1553 = vmatprep.subr.mxu0 0.0
    %1554 = vmatpush1.msra.mxu0 0.0
    %1555 = vmatprep.subr.mxu0 0.0
    %1556 = vmatpush1.msra.mxu0 0.0
    %1557 = vmatprep.subr.mxu0 0.0
    %1558 = vmatpush1.msra.mxu0 0.0
    %1559 = vmatprep.subr.mxu0 0.0
    %1560 = vmatpush1.msra.mxu0 0.0
    %1561 = vmatprep.subr.mxu0 0.0
    %1562 = vmatpush1.msra.mxu0 0.0
    %1563 = vmatprep.subr.mxu0 0.0
    %1564 = vmatpush1.msra.mxu0 0.0
    %1565 = vmatprep.subr.mxu0 0.0
    %1566 = vmatpush1.msra.mxu0 0.0
    %1567 = vmatprep.subr.mxu0 0.0
    %1568 = vmatpush1.msra.mxu0 0.0
    %1569 = vmatprep.subr.mxu0 0.0
    %1570 = vmatpush1.msra.mxu0 0.0
    %1571 = vmatprep.subr.mxu0 0.0
    %1572 = vmatpush1.msra.mxu0 0.0
    %1573 = vmatprep.subr.mxu0 0.0
    %1574 = vmatpush1.msra.mxu0 0.0
    %1575 = vmatprep.subr.mxu0 0.0
    %1576 = vmatpush1.msra.mxu0 0.0
    %1577 = vmatprep.subr.mxu0 0.0
    %1578 = vmatpush1.msra.mxu0 0.0
    %1579 = vmatprep.subr.mxu0 0.0
    %1580 = vmatpush1.msra.mxu0 0.0
    %1581 = vmatprep.subr.mxu0 0.0
    %1582 = vmatpush1.msra.mxu0 0.0
    %1583 = vmatprep.subr.mxu0 0.0
    %1584 = vmatpush1.msra.mxu0 0.0
    %1585 = vmatprep.subr.mxu0 0.0
    %1586 = vmatpush1.msra.mxu0 0.0
    %1587 = vmatprep.subr.mxu0 0.0
    %1588 = vmatpush1.msra.mxu0 0.0
    %1589 = vmatprep.subr.mxu0 0.0
    %1590 = vmatpush1.msra.mxu0 0.0
    %1591 = vmatprep.subr.mxu0 0.0
    %1592 = vmatpush1.msra.mxu0 0.0
    %1593 = vmatprep.subr.mxu0 0.0
    %1594 = vmatpush1.msra.mxu0 0.0
    %1595 = vmatprep.mubr.f32.mxu0 0.0
    %1596 = vmatmul.mubr.f32.gmra.mrb[0].mxu0 %v1529
    %v1597 = vpop.f32.mrb[0].mxu0
    %v1598 = vadd.f32 %v1523, %v1597
    %v1599 = vpop.f32.mrb[0].mxu0
    %1600 = vdwg.mxu0
    %vm1601 = vcmask 33792
    %1602 = vst.msk [vmem:[#allocation7] sm:$0x3] %vm1601, %v1598
    // Predicated region
    $region58: #{cnn_lstm_forward.1} parent=1 // pred_check
      _
    $region59: #{cnn_lstm_forward.1} parent=1 // pred_check_branch
      %1604 = sbr.rel (0) target = $region61
    $region60: #{cnn_lstm_forward.1} parent=1 // pred_region
      %s1606 = ssub.s32 32, 32
      %1607 = vsyncadd [#allocation4], %s1606
      %s1609 = sshll.u32 [#allocation7], 4
      %s1610 = int_to_ptr.vmem [resolvable:$true] %s1609
      %1612 = dma.vmem_to_hbm [thread:$0]  %s1610, 32, %s12, [#allocation4]
    $region61: #{cnn_lstm_forward.1} parent=1 // pred_fallthru
      _
    // Predicated region
    $region62: #{cnn_lstm_forward.1} parent=1 // pred_check
      _
    $region63: #{cnn_lstm_forward.1} parent=1 // pred_check_branch
      %1614 = sbr.rel (0) target = $region65
    $region64: #{cnn_lstm_forward.1} parent=1 // pred_region
      %1615 = dma.done [#allocation4], 32
    $region65: #{cnn_lstm_forward.1} parent=1 // pred_fallthru
      _
    %1616 = vsyncpa [#allocation3], 1
    %1617 = vsyncpa [#allocation6], 1
    %1618 = vsyncpa [#allocation4], 1

</llo_original>
